<compile_context>
chip_gen: v7x
topology: tpu7x:2x2x1
jax: 0.10.0
libtpu: 0.0.40
codegen_flags: <defaults>
</compile_context>

<pallas_src>
import numpy as np
import jax
import jax.numpy as jnp
from jax.experimental import pallas as pl
from jax.experimental.pallas import tpu as pltpu

# Real (module) hidden sizes and lane/MXU-aligned padded sizes.
H1_REAL, H2_REAL = 500, 300
H1, H2 = 512, 384                  # padded per-head hidden dims
OUT_LANES = 128                    # packed output lane width (mu cols + value col)
MU_LANES = 64                      # cols [0, MU_LANES) carry mu (tanh applied)
VAL_COL = 64                       # value lives in this column (no tanh)
MAX_ROW_TILE = 1024                # batch tile for large B


def _round_up(x, m):
    return (x + m - 1) // m * m


# -----------------------------------------------------------------------------
# Pallas kernel: fused actor + critic MLP (bf16 weights, f32 accumulate)
# -----------------------------------------------------------------------------
def actor_critic_kernel(x_ref, w1_ref, b1_ref, w2a_ref, b2a_ref,
                        w2c_ref, b2c_ref, w3_ref, b3_ref, out_ref):
    # x: [tb, input_dim] f32 -> bf16 inside the kernel (no wrapper pad/copy pass).
    x = x_ref[...].astype(jnp.bfloat16)

    # ---- fused layer 1 (actor | critic along N): [tb, 2*H1] ----
    h1 = jnp.dot(x, w1_ref[...], preferred_element_type=jnp.float32) + b1_ref[...]
    h1 = jnp.maximum(h1, 0.0).astype(jnp.bfloat16)
    h1a = h1[:, :H1]            # lane-aligned split (512 = 4 * 128)
    h1c = h1[:, H1:]

    # ---- layer 2, per head ----
    h2a = jnp.dot(h1a, w2a_ref[...], preferred_element_type=jnp.float32) + b2a_ref[...]
    h2a = jnp.maximum(h2a, 0.0).astype(jnp.bfloat16)
    h2c = jnp.dot(h1c, w2c_ref[...], preferred_element_type=jnp.float32) + b2c_ref[...]
    h2c = jnp.maximum(h2c, 0.0).astype(jnp.bfloat16)

    # ---- fused layer 3 (K = 2*H2) against block-structured W3 -> packed output ----
    h2 = jnp.concatenate([h2a, h2c], axis=1)                       # [tb, 768]
    z = jnp.dot(h2, w3_ref[...], preferred_element_type=jnp.float32) + b3_ref[...]
    col = jax.lax.broadcasted_iota(jnp.int32, z.shape, 1)
    # tanh only on the mu columns; value column (and zero-padded cols) pass through.
    out_ref[...] = jnp.where(col < MU_LANES, jnp.tanh(z), z).astype(out_ref.dtype)


def actor_critic_forward(states, kernel_params):
    """Fused (mu, value) forward.  Returns packed [B, 128] f32:
       cols [0, action_dim) = mu, col VAL_COL = value."""
    (w1c, b1c, w2a, b2a, w2c, b2c, w3c, b3c) = kernel_params
    B, input_dim = states.shape

    # Batch tiling: single full block for small B; 1024-row pipelined tiles (ragged
    # last tile handled by Pallas) for large B.  No wrapper-side padded x copy.
    tb = B if B <= MAX_ROW_TILE else MAX_ROW_TILE
    grid = (pl.cdiv(B, tb),)

    weights = (w1c, b1c, w2a, b2a, w2c, b2c, w3c, b3c)
    weight_specs = [pl.BlockSpec(w.shape, lambda i: (0, 0)) for w in weights]

    flops = 2 * B * (input_dim * 2 * H1 + 2 * H1 * H2 + 2 * H2 * OUT_LANES)
    bytes_weights = sum(int(np.prod(w.shape)) * w.dtype.itemsize for w in weights)
    bytes_accessed = (bytes_weights
                      + B * input_dim * states.dtype.itemsize
                      + B * OUT_LANES * 4)

    out = pl.pallas_call(
        actor_critic_kernel,
        out_shape=jax.ShapeDtypeStruct((B, OUT_LANES), jnp.float32),
        grid=grid,
        in_specs=[pl.BlockSpec((tb, input_dim), lambda i: (i, 0))] + weight_specs,
        out_specs=pl.BlockSpec((tb, OUT_LANES), lambda i: (i, 0)),
        compiler_params=pltpu.CompilerParams(
            dimension_semantics=("parallel",),
            vmem_limit_bytes=48 * 1024 * 1024),
        cost_estimate=pl.CostEstimate(flops=flops,
                                      transcendentals=B * OUT_LANES,
                                      bytes_accessed=bytes_accessed),
    )(states, *weights)
    return out


def forward(states, kernel_params, action_dim):
    """Matches ActorCritic.forward(states): actor mean only (real columns sliced out)."""
    out = actor_critic_forward(states, kernel_params)
    return out[:, :action_dim]


# -----------------------------------------------------------------------------
# Parameter construction (mirrors __init__: orthogonal W, zero b) + kernel packing
# -----------------------------------------------------------------------------
def make_params(key, input_dim, action_dim):
    ks = jax.random.split(key, 6)
    orth1 = jax.nn.initializers.orthogonal(scale=1.0)
    orth001 = jax.nn.initializers.orthogonal(scale=0.01)
    # Stored as [in, out] (transposed vs PyTorch's [out, in]) so forward is x @ W + b.
    actor = (orth1(ks[0], (input_dim, H1_REAL), jnp.float32), jnp.zeros((H1_REAL,), jnp.float32),
             orth1(ks[1], (H1_REAL, H2_REAL), jnp.float32),   jnp.zeros((H2_REAL,), jnp.float32),
             orth001(ks[2], (H2_REAL, action_dim), jnp.float32), jnp.zeros((action_dim,), jnp.float32))
    critic = (orth1(ks[3], (input_dim, H1_REAL), jnp.float32), jnp.zeros((H1_REAL,), jnp.float32),
              orth1(ks[4], (H1_REAL, H2_REAL), jnp.float32),   jnp.zeros((H2_REAL,), jnp.float32),
              orth1(ks[5], (H2_REAL, 1), jnp.float32),         jnp.zeros((1,), jnp.float32))
    return actor, critic


def pack_params_for_kernel(actor_params, critic_params, input_dim, action_dim):
    """Zero-pad + fuse the two heads' weights into the kernel layout (bf16 weights,
    f32 biases).  Zero pads are bit-transparent through relu / the final slice."""
    (w1, b1, w2, b2, w3, b3) = actor_params
    (cw1, cb1, cw2, cb2, cw3, cb3) = critic_params
    bf16 = jnp.bfloat16

    # Layer 1 fused along N: [input_dim, 2*H1] = [W1_actor | W1_critic].
    w1c = jnp.zeros((input_dim, 2 * H1), bf16)
    w1c = w1c.at[:, :H1_REAL].set(w1.astype(bf16))
    w1c = w1c.at[:, H1:H1 + H1_REAL].set(cw1.astype(bf16))
    b1c = jnp.zeros((1, 2 * H1), jnp.float32)
    b1c = b1c.at[0, :H1_REAL].set(b1)
    b1c = b1c.at[0, H1:H1 + H1_REAL].set(cb1)

    # Layer 2 per head: [H1, H2].
    w2a = jnp.zeros((H1, H2), bf16).at[:H1_REAL, :H2_REAL].set(w2.astype(bf16))
    b2a = jnp.zeros((1, H2), jnp.float32).at[0, :H2_REAL].set(b2)
    w2cp = jnp.zeros((H1, H2), bf16).at[:H1_REAL, :H2_REAL].set(cw2.astype(bf16))
    b2cp = jnp.zeros((1, H2), jnp.float32).at[0, :H2_REAL].set(cb2)

    # Layer 3 fused along K: [2*H2, 128]; actor block -> cols [0, action_dim),
    # critic block -> column VAL_COL.  Off-block entries are zero.
    w3c = jnp.zeros((2 * H2, OUT_LANES), bf16)
    w3c = w3c.at[:H2_REAL, :action_dim].set(w3.astype(bf16))
    w3c = w3c.at[H2:H2 + H2_REAL, VAL_COL:VAL_COL + 1].set(cw3.astype(bf16))
    b3c = jnp.zeros((1, OUT_LANES), jnp.float32)
    b3c = b3c.at[0, :action_dim].set(b3)
    b3c = b3c.at[0, VAL_COL].set(cb3[0])

    return (w1c, b1c, w2a, b2a, w2cp, b2cp, w3c, b3c)


# -----------------------------------------------------------------------------
# Pure-JAX references (same bf16-weight / f32-accumulate numerics as the kernel)
# -----------------------------------------------------------------------------
def _mlp_bf16(x, w1, b1, w2, b2, w3, b3):
    xb = x.astype(jnp.bfloat16)
    h = jnp.dot(xb, w1.astype(jnp.bfloat16), preferred_element_type=jnp.float32) + b1
    h = jnp.maximum(h, 0.0).astype(jnp.bfloat16)
    h = jnp.dot(h, w2.astype(jnp.bfloat16), preferred_element_type=jnp.float32) + b2
    h = jnp.maximum(h, 0.0).astype(jnp.bfloat16)
    return jnp.dot(h, w3.astype(jnp.bfloat16), preferred_element_type=jnp.float32) + b3


def actor_forward_ref(x, actor_params):
    return jnp.tanh(_mlp_bf16(x, *actor_params))


def critic_forward_ref(x, critic_params):
    return _mlp_bf16(x, *critic_params)


if __name__ == "__main__":
    # Small, module-consistent shapes: batch=2, input_dim=32, action_dim=2 (steer/throttle).
    B, INPUT_DIM, ACTION_DIM = 2, 32, 2

    key = jax.random.PRNGKey(0)
    kx, kp = jax.random.split(key)
    states = jax.random.normal(kx, (B, INPUT_DIM), dtype=jnp.float32)
    actor_p, critic_p = make_params(kp, INPUT_DIM, ACTION_DIM)
    kernel_p = pack_params_for_kernel(actor_p, critic_p, INPUT_DIM, ACTION_DIM)

    # action_logstd is a module Parameter but unused in forward().
    action_logstd = jnp.full((ACTION_DIM,), np.log(0.1), dtype=jnp.float32)  # noqa: F841
    # TODO(synk): Normal.rsample / log_prob / .detach().numpy() in select_action/forward
    # are host-side distribution logic, not part of the fused (mu, value) kernel.

    out = actor_critic_forward(states, kernel_p)
    out = jax.block_until_ready(out)
    mu = out[:, :ACTION_DIM]                 # ActorCritic.forward(states)
    value = out[:, VAL_COL:VAL_COL + 1]      # _forward_critic(states)

    mu_ref = actor_forward_ref(states, actor_p)
    val_ref = critic_forward_ref(states, critic_p)
    np.testing.assert_allclose(np.asarray(mu), np.asarray(mu_ref), rtol=2e-3, atol=2e-3)
    np.testing.assert_allclose(np.asarray(value), np.asarray(val_ref), rtol=2e-3, atol=2e-3)

    print("KERNEL_OK")
</pallas_src>

<mosaic_0001>
module attributes {stable_mosaic.version = 11 : i64} {
  func.func @actor_critic_kernel(%arg0: i32, %arg1: memref<2x32xf32, #tpu.memory_space<vmem>>, %arg2: memref<32x1024xbf16, #tpu.memory_space<vmem>>, %arg3: memref<1x1024xf32, #tpu.memory_space<vmem>>, %arg4: memref<512x384xbf16, #tpu.memory_space<vmem>>, %arg5: memref<1x384xf32, #tpu.memory_space<vmem>>, %arg6: memref<512x384xbf16, #tpu.memory_space<vmem>>, %arg7: memref<1x384xf32, #tpu.memory_space<vmem>>, %arg8: memref<768x128xbf16, #tpu.memory_space<vmem>>, %arg9: memref<1x128xf32, #tpu.memory_space<vmem>>, %arg10: memref<2x128xf32, #tpu.memory_space<vmem>>) attributes {dimension_semantics = [#tpu.dimension_semantics<parallel>], iteration_bounds = array<i64: 1>, scalar_prefetch = 0 : i64, scratch_operands = 0 : i64, tpu.core_type = #tpu.core_type<tc>, window_params = [{transform_indices = @transform_0, window_bounds = array<i64: 2, 32>}, {pipeline_mode = #tpu.pipeline_mode<synchronous>, transform_indices = @transform_1, window_bounds = array<i64: 32, 1024>}, {pipeline_mode = #tpu.pipeline_mode<synchronous>, transform_indices = @transform_2, window_bounds = array<i64: 1, 1024>}, {pipeline_mode = #tpu.pipeline_mode<synchronous>, transform_indices = @transform_3, window_bounds = array<i64: 512, 384>}, {pipeline_mode = #tpu.pipeline_mode<synchronous>, transform_indices = @transform_4, window_bounds = array<i64: 1, 384>}, {pipeline_mode = #tpu.pipeline_mode<synchronous>, transform_indices = @transform_5, window_bounds = array<i64: 512, 384>}, {pipeline_mode = #tpu.pipeline_mode<synchronous>, transform_indices = @transform_6, window_bounds = array<i64: 1, 384>}, {pipeline_mode = #tpu.pipeline_mode<synchronous>, transform_indices = @transform_7, window_bounds = array<i64: 768, 128>}, {pipeline_mode = #tpu.pipeline_mode<synchronous>, transform_indices = @transform_8, window_bounds = array<i64: 1, 128>}, {transform_indices = @transform_9, window_bounds = array<i64: 2, 128>}]} {
    %c0 = arith.constant 0 : index
    %c0_0 = arith.constant 0 : index
    %0 = vector.load %arg1[%c0, %c0_0] : memref<2x32xf32, #tpu.memory_space<vmem>>, vector<2x32xf32>
    %1 = arith.truncf %0 : vector<2x32xf32> to vector<2x32xbf16>
    %c0_1 = arith.constant 0 : index
    %c0_2 = arith.constant 0 : index
    %2 = vector.load %arg2[%c0_1, %c0_2] : memref<32x1024xbf16, #tpu.memory_space<vmem>>, vector<32x1024xbf16>
    %cst = arith.constant dense<0.000000e+00> : vector<2x1024xf32>
    %3 = tpu.matmul %1, %2, %cst {dimension_numbers = #tpu.dot_dimension_numbers<[1], [0], [0], [1], [0, 0, 1, 1], [], []>} : vector<2x32xbf16>, vector<32x1024xbf16>, vector<2x1024xf32> -> vector<2x1024xf32>
    %c0_3 = arith.constant 0 : index
    %c0_4 = arith.constant 0 : index
    %4 = vector.load %arg3[%c0_3, %c0_4] : memref<1x1024xf32, #tpu.memory_space<vmem>>, vector<1x1024xf32>
    %5 = vector.broadcast %4 : vector<1x1024xf32> to vector<2x1024xf32>
    %6 = arith.addf %3, %5 : vector<2x1024xf32>
    %cst_5 = arith.constant 0.000000e+00 : f32
    %7 = vector.broadcast %cst_5 : f32 to vector<2x1024xf32>
    %8 = arith.maximumf %6, %7 : vector<2x1024xf32>
    %9 = arith.truncf %8 : vector<2x1024xf32> to vector<2x1024xbf16>
    %10 = vector.extract_strided_slice %9 {offsets = [0, 0], sizes = [2, 512], strides = [1, 1]} : vector<2x1024xbf16> to vector<2x512xbf16>
    %11 = vector.extract_strided_slice %9 {offsets = [0, 512], sizes = [2, 512], strides = [1, 1]} : vector<2x1024xbf16> to vector<2x512xbf16>
    %c0_6 = arith.constant 0 : index
    %c0_7 = arith.constant 0 : index
    %12 = vector.load %arg4[%c0_6, %c0_7] : memref<512x384xbf16, #tpu.memory_space<vmem>>, vector<512x384xbf16>
    %cst_8 = arith.constant dense<0.000000e+00> : vector<2x384xf32>
    %13 = tpu.matmul %10, %12, %cst_8 {dimension_numbers = #tpu.dot_dimension_numbers<[1], [0], [0], [1], [0, 0, 1, 1], [], []>} : vector<2x512xbf16>, vector<512x384xbf16>, vector<2x384xf32> -> vector<2x384xf32>
    %c0_9 = arith.constant 0 : index
    %c0_10 = arith.constant 0 : index
    %14 = vector.load %arg5[%c0_9, %c0_10] : memref<1x384xf32, #tpu.memory_space<vmem>>, vector<1x384xf32>
    %15 = vector.broadcast %14 : vector<1x384xf32> to vector<2x384xf32>
    %16 = arith.addf %13, %15 : vector<2x384xf32>
    %cst_11 = arith.constant 0.000000e+00 : f32
    %17 = vector.broadcast %cst_11 : f32 to vector<2x384xf32>
    %18 = arith.maximumf %16, %17 : vector<2x384xf32>
    %19 = arith.truncf %18 : vector<2x384xf32> to vector<2x384xbf16>
    %c0_12 = arith.constant 0 : index
    %c0_13 = arith.constant 0 : index
    %20 = vector.load %arg6[%c0_12, %c0_13] : memref<512x384xbf16, #tpu.memory_space<vmem>>, vector<512x384xbf16>
    %cst_14 = arith.constant dense<0.000000e+00> : vector<2x384xf32>
    %21 = tpu.matmul %11, %20, %cst_14 {dimension_numbers = #tpu.dot_dimension_numbers<[1], [0], [0], [1], [0, 0, 1, 1], [], []>} : vector<2x512xbf16>, vector<512x384xbf16>, vector<2x384xf32> -> vector<2x384xf32>
    %c0_15 = arith.constant 0 : index
    %c0_16 = arith.constant 0 : index
    %22 = vector.load %arg7[%c0_15, %c0_16] : memref<1x384xf32, #tpu.memory_space<vmem>>, vector<1x384xf32>
    %23 = vector.broadcast %22 : vector<1x384xf32> to vector<2x384xf32>
    %24 = arith.addf %21, %23 : vector<2x384xf32>
    %cst_17 = arith.constant 0.000000e+00 : f32
    %25 = vector.broadcast %cst_17 : f32 to vector<2x384xf32>
    %26 = arith.maximumf %24, %25 : vector<2x384xf32>
    %27 = arith.truncf %26 : vector<2x384xf32> to vector<2x384xbf16>
    %28 = tpu.concatenate %19, %27 in 1 : vector<2x384xbf16>, vector<2x384xbf16> -> vector<2x768xbf16>
    %c0_18 = arith.constant 0 : index
    %c0_19 = arith.constant 0 : index
    %29 = vector.load %arg8[%c0_18, %c0_19] : memref<768x128xbf16, #tpu.memory_space<vmem>>, vector<768x128xbf16>
    %cst_20 = arith.constant dense<0.000000e+00> : vector<2x128xf32>
    %30 = tpu.matmul %28, %29, %cst_20 {dimension_numbers = #tpu.dot_dimension_numbers<[1], [0], [0], [1], [0, 0, 1, 1], [], []>} : vector<2x768xbf16>, vector<768x128xbf16>, vector<2x128xf32> -> vector<2x128xf32>
    %c0_21 = arith.constant 0 : index
    %c0_22 = arith.constant 0 : index
    %31 = vector.load %arg9[%c0_21, %c0_22] : memref<1x128xf32, #tpu.memory_space<vmem>>, vector<1x128xf32>
    %32 = vector.broadcast %31 : vector<1x128xf32> to vector<2x128xf32>
    %33 = arith.addf %30, %32 : vector<2x128xf32>
    %34 = tpu.iota {dimensions = array<i32: 1>} : vector<2x128xi32>
    %c64_i32 = arith.constant 64 : i32
    %35 = vector.broadcast %c64_i32 : i32 to vector<2x128xi32>
    %36 = arith.cmpi slt, %34, %35 : vector<2x128xi32>
    %37 = math.tanh %33 : vector<2x128xf32>
    %38 = arith.select %36, %37, %33 : vector<2x128xi1>, vector<2x128xf32>
    %c0_23 = arith.constant 0 : index
    %c0_24 = arith.constant 0 : index
    %39 = vector.load %arg10[%c0_23, %c0_24] : memref<2x128xf32, #tpu.memory_space<vmem>>, vector<2x128xf32>
    tpu.vector_store %arg10[%c0_23, %c0_24], %38 {strides = array<i32>} : memref<2x128xf32, #tpu.memory_space<vmem>>, vector<2x128xf32>,
    return
  }
  func.func @transform_0(%arg0: i32) -> (i32, i32) {
    %c0_i32 = arith.constant 0 : i32
    %c0_i32_0 = arith.constant 0 : i32
    return %arg0, %c0_i32 : i32, i32
  }
  func.func @transform_1(%arg0: i32) -> (i32, i32) {
    %c0_i32 = arith.constant 0 : i32
    %c0_i32_0 = arith.constant 0 : i32
    %c0_i32_1 = arith.constant 0 : i32
    return %c0_i32, %c0_i32_0 : i32, i32
  }
  func.func @transform_2(%arg0: i32) -> (i32, i32) {
    %c0_i32 = arith.constant 0 : i32
    %c0_i32_0 = arith.constant 0 : i32
    %c0_i32_1 = arith.constant 0 : i32
    return %c0_i32, %c0_i32_0 : i32, i32
  }
  func.func @transform_3(%arg0: i32) -> (i32, i32) {
    %c0_i32 = arith.constant 0 : i32
    %c0_i32_0 = arith.constant 0 : i32
    %c0_i32_1 = arith.constant 0 : i32
    return %c0_i32, %c0_i32_0 : i32, i32
  }
  func.func @transform_4(%arg0: i32) -> (i32, i32) {
    %c0_i32 = arith.constant 0 : i32
    %c0_i32_0 = arith.constant 0 : i32
    %c0_i32_1 = arith.constant 0 : i32
    return %c0_i32, %c0_i32_0 : i32, i32
  }
  func.func @transform_5(%arg0: i32) -> (i32, i32) {
    %c0_i32 = arith.constant 0 : i32
    %c0_i32_0 = arith.constant 0 : i32
    %c0_i32_1 = arith.constant 0 : i32
    return %c0_i32, %c0_i32_0 : i32, i32
  }
  func.func @transform_6(%arg0: i32) -> (i32, i32) {
    %c0_i32 = arith.constant 0 : i32
    %c0_i32_0 = arith.constant 0 : i32
    %c0_i32_1 = arith.constant 0 : i32
    return %c0_i32, %c0_i32_0 : i32, i32
  }
  func.func @transform_7(%arg0: i32) -> (i32, i32) {
    %c0_i32 = arith.constant 0 : i32
    %c0_i32_0 = arith.constant 0 : i32
    %c0_i32_1 = arith.constant 0 : i32
    return %c0_i32, %c0_i32_0 : i32, i32
  }
  func.func @transform_8(%arg0: i32) -> (i32, i32) {
    %c0_i32 = arith.constant 0 : i32
    %c0_i32_0 = arith.constant 0 : i32
    %c0_i32_1 = arith.constant 0 : i32
    return %c0_i32, %c0_i32_0 : i32, i32
  }
  func.func @transform_9(%arg0: i32) -> (i32, i32) {
    %c0_i32 = arith.constant 0 : i32
    %c0_i32_0 = arith.constant 0 : i32
    return %arg0, %c0_i32 : i32, i32
  }
}

</mosaic_0001>

<llo_original>
// kernel: tpu_custom_call.1
$region0: #{tpu_custom_call.1}
  #allocation0 [shape = 'u32[]', space=smem, size = 0x4, offset = 0x4, fixed_abs, tag = 'smem constant byte address 0x4 - core index']
  #allocation1 [shape = 'u32[144,128]{1,0:T(1,128)}', space=vmem, size = 0x12000, scoped, tag = 'internal scratch']
  %s0 = inlined_call_operand.hbm [shape: f32[2,32], index: 0, kind: input, shape index: {}]
  %s1 = inlined_call_operand.hbm [shape: bf16[32,1024], index: 1, kind: input, shape index: {}]
  %s2 = inlined_call_operand.hbm [shape: f32[1,1024], index: 2, kind: input, shape index: {}]
  %s3 = inlined_call_operand.hbm [shape: bf16[512,384], index: 3, kind: input, shape index: {}]
  %s4 = inlined_call_operand.vmem [shape: f32[1,384], index: 4, kind: input, shape index: {}]
  %s5 = inlined_call_operand.hbm [shape: bf16[512,384], index: 5, kind: input, shape index: {}]
  %s6 = inlined_call_operand.vmem [shape: f32[1,384], index: 6, kind: input, shape index: {}]
  %s7 = inlined_call_operand.hbm [shape: bf16[768,128], index: 7, kind: input, shape index: {}]
  %s8 = inlined_call_operand.vmem [shape: f32[1,128], index: 8, kind: input, shape index: {}]
  %s9 = inlined_call_operand.hbm [shape: f32[2,128], index: 9, kind: output, shape index: {}]
  %s10 = sld [smem:[#allocation0]]
  $region70: #{tpu_custom_call.1} parent=0
    _
  %s12 = ssub.s32 1, %s10
  %s13 = scalar_select 0, %s12, %s10
  $region1: #{tpu_custom_call.1} parent=0
    #allocation2 [shape = 'u8[1024]{0}', space=vmem, size = 0x400, scoped, tag = 'input window, operand 0, single buffered']
    #allocation3 [shape = 's32[1]{0}', space=sflag, size = 0x4, scoped, tag = 'scoped memory for tpu_custom_call.1']
    #allocation4 [shape = 's32[1]{0}', space=sflag, size = 0x4, scoped, tag = 'scoped memory for tpu_custom_call.1']
    #allocation5 [shape = 'u8[65536]{0}', space=vmem, size = 0x10000, scoped, tag = 'input window, operand 1, single buffered']
    #allocation6 [shape = 's32[1]{0}', space=sflag, size = 0x4, scoped, tag = 'scoped memory for tpu_custom_call.1']
    #allocation7 [shape = 'u8[4096]{0}', space=vmem, size = 0x1000, scoped, tag = 'input window, operand 2, single buffered']
    #allocation8 [shape = 'u8[393216]{0}', space=vmem, size = 0x60000, scoped, tag = 'input window, operand 3, single buffered']
    #allocation9 [shape = 's32[1]{0}', space=sflag, size = 0x4, scoped, tag = 'scoped memory for tpu_custom_call.1']
    #allocation10 [shape = 'u8[393216]{0}', space=vmem, size = 0x60000, scoped, tag = 'input window, operand 5, single buffered']
    #allocation11 [shape = 'u8[196608]{0}', space=vmem, size = 0x30000, scoped, tag = 'input window, operand 7, single buffered']
    #allocation12 [shape = 's32[1]{0}', space=sflag, size = 0x4, scoped, tag = 'scoped memory for tpu_custom_call.1']
    #allocation13 [shape = 'u8[1024]{0}', space=vmem, size = 0x400, scoped, tag = 'output window, operand 0, single buffered']
    %14 = vsyncpa [#allocation3], 0
    %15 = vsyncpa [#allocation6], 0
    %16 = vsyncpa [#allocation9], 0
    %17 = vsyncpa [#allocation12], 0
    %18 = vsyncpa [#allocation4], 0
    // Predicated region
    $region2: #{tpu_custom_call.1} parent=1 // pred_check
      _
    $region3: #{tpu_custom_call.1} parent=1 // pred_check_branch
      %20 = sbr.rel (0) target = $region5
    $region4: #{tpu_custom_call.1} parent=1 // pred_region
      %s22 = ssub.s32 32, 32
      %23 = vsyncadd [#allocation3], %s22
      %s25 = sshll.u32 [#allocation2], 4
      %s26 = int_to_ptr.vmem [resolvable:$true] %s25
      %28 = dma.hbm_to_vmem [thread:$0]  %s0, 32, %s26, [#allocation3]
    $region5: #{tpu_custom_call.1} parent=1 // pred_fallthru
      _
    // Predicated region
    $region6: #{tpu_custom_call.1} parent=1 // pred_check
      _
    $region7: #{tpu_custom_call.1} parent=1 // pred_check_branch
      %30 = sbr.rel (0) target = $region9
    $region8: #{tpu_custom_call.1} parent=1 // pred_region
      %s32 = ssub.s32 2048, 2048
      %33 = vsyncadd [#allocation6], %s32
      %s34 = sshll.u32 [#allocation5], 4
      %s35 = int_to_ptr.vmem [resolvable:$true] %s34
      %40 = dma.hbm_to_vmem [thread:$0]  %s1, 2048, %s35, [#allocation6], 512, 512, 32
    $region9: #{tpu_custom_call.1} parent=1 // pred_fallthru
      _
    // Predicated region
    $region10: #{tpu_custom_call.1} parent=1 // pred_check
      _
    $region11: #{tpu_custom_call.1} parent=1 // pred_check_branch
      %42 = sbr.rel (0) target = $region13
    $region12: #{tpu_custom_call.1} parent=1 // pred_region
      %s44 = ssub.s32 128, 128
      %45 = vsyncadd [#allocation6], %s44
      %s47 = sshll.u32 [#allocation7], 4
      %s48 = int_to_ptr.vmem [resolvable:$true] %s47
      %50 = dma.hbm_to_vmem [thread:$0]  %s2, 128, %s48, [#allocation6]
    $region13: #{tpu_custom_call.1} parent=1 // pred_fallthru
      _
    // Predicated region
    $region14: #{tpu_custom_call.1} parent=1 // pred_check
      _
    $region15: #{tpu_custom_call.1} parent=1 // pred_check_branch
      %52 = sbr.rel (0) target = $region17
    $region16: #{tpu_custom_call.1} parent=1 // pred_region
      %s54 = ssub.s32 12288, 12288
      %55 = vsyncadd [#allocation9], %s54
      %s56 = sshll.u32 [#allocation8], 4
      %s57 = int_to_ptr.vmem [resolvable:$true] %s56
      %62 = dma.hbm_to_vmem [thread:$0]  %s3, 12288, %s57, [#allocation9], 192, 192, 12
    $region17: #{tpu_custom_call.1} parent=1 // pred_fallthru
      _
    // Predicated region
    $region18: #{tpu_custom_call.1} parent=1 // pred_check
      _
    $region19: #{tpu_custom_call.1} parent=1 // pred_check_branch
      %64 = sbr.rel (0) target = $region21
    $region20: #{tpu_custom_call.1} parent=1 // pred_region
      _
    $region21: #{tpu_custom_call.1} parent=1 // pred_fallthru
      _
    // Predicated region
    $region22: #{tpu_custom_call.1} parent=1 // pred_check
      _
    $region23: #{tpu_custom_call.1} parent=1 // pred_check_branch
      %66 = sbr.rel (0) target = $region25
    $region24: #{tpu_custom_call.1} parent=1 // pred_region
      %s68 = ssub.s32 12288, 12288
      %69 = vsyncadd [#allocation9], %s68
      %s70 = sshll.u32 [#allocation10], 4
      %s71 = int_to_ptr.vmem [resolvable:$true] %s70
      %76 = dma.hbm_to_vmem [thread:$0]  %s5, 12288, %s71, [#allocation9], 192, 192, 12
    $region25: #{tpu_custom_call.1} parent=1 // pred_fallthru
      _
    // Predicated region
    $region26: #{tpu_custom_call.1} parent=1 // pred_check
      _
    $region27: #{tpu_custom_call.1} parent=1 // pred_check_branch
      %78 = sbr.rel (0) target = $region29
    $region28: #{tpu_custom_call.1} parent=1 // pred_region
      _
    $region29: #{tpu_custom_call.1} parent=1 // pred_fallthru
      _
    // Predicated region
    $region30: #{tpu_custom_call.1} parent=1 // pred_check
      _
    $region31: #{tpu_custom_call.1} parent=1 // pred_check_branch
      %80 = sbr.rel (0) target = $region33
    $region32: #{tpu_custom_call.1} parent=1 // pred_region
      %s82 = ssub.s32 6144, 6144
      %83 = vsyncadd [#allocation12], %s82
      %s84 = sshll.u32 [#allocation11], 4
      %s85 = int_to_ptr.vmem [resolvable:$true] %s84
      %90 = dma.hbm_to_vmem [thread:$0]  %s7, 6144, %s85, [#allocation12], 64, 64, 4
    $region33: #{tpu_custom_call.1} parent=1 // pred_fallthru
      _
    // Predicated region
    $region34: #{tpu_custom_call.1} parent=1 // pred_check
      _
    $region35: #{tpu_custom_call.1} parent=1 // pred_check_branch
      %92 = sbr.rel (0) target = $region37
    $region36: #{tpu_custom_call.1} parent=1 // pred_region
      _
    $region37: #{tpu_custom_call.1} parent=1 // pred_fallthru
      _
    // Predicated region
    $region38: #{tpu_custom_call.1} parent=1 // pred_check
      _
    $region39: #{tpu_custom_call.1} parent=1 // pred_check_branch
      %94 = sbr.rel (0) target = $region41
    $region40: #{tpu_custom_call.1} parent=1 // pred_region
      %95 = dma.done [#allocation3], 32
    $region41: #{tpu_custom_call.1} parent=1 // pred_fallthru
      _
    // Predicated region
    $region42: #{tpu_custom_call.1} parent=1 // pred_check
      _
    $region43: #{tpu_custom_call.1} parent=1 // pred_check_branch
      %97 = sbr.rel (0) target = $region45
    $region44: #{tpu_custom_call.1} parent=1 // pred_region
      %98 = dma.done [#allocation6], 2048
    $region45: #{tpu_custom_call.1} parent=1 // pred_fallthru
      _
    // Predicated region
    $region46: #{tpu_custom_call.1} parent=1 // pred_check
      _
    $region47: #{tpu_custom_call.1} parent=1 // pred_check_branch
      %100 = sbr.rel (0) target = $region49
    $region48: #{tpu_custom_call.1} parent=1 // pred_region
      %101 = dma.done [#allocation6], 128
    $region49: #{tpu_custom_call.1} parent=1 // pred_fallthru
      _
    // Predicated region
    $region50: #{tpu_custom_call.1} parent=1 // pred_check
      _
    $region51: #{tpu_custom_call.1} parent=1 // pred_check_branch
      %103 = sbr.rel (0) target = $region53
    $region52: #{tpu_custom_call.1} parent=1 // pred_region
      %104 = dma.done [#allocation9], 12288
    $region53: #{tpu_custom_call.1} parent=1 // pred_fallthru
      _
    // Predicated region
    $region54: #{tpu_custom_call.1} parent=1 // pred_check
      _
    $region55: #{tpu_custom_call.1} parent=1 // pred_check_branch
      %106 = sbr.rel (0) target = $region57
    $region56: #{tpu_custom_call.1} parent=1 // pred_region
      %107 = dma.done [#allocation9], 12288
    $region57: #{tpu_custom_call.1} parent=1 // pred_fallthru
      _
    // Predicated region
    $region58: #{tpu_custom_call.1} parent=1 // pred_check
      _
    $region59: #{tpu_custom_call.1} parent=1 // pred_check_branch
      %109 = sbr.rel (0) target = $region61
    $region60: #{tpu_custom_call.1} parent=1 // pred_region
      %110 = dma.done [#allocation12], 6144
    $region61: #{tpu_custom_call.1} parent=1 // pred_fallthru
      _
    %v112 = vld [vmem:[#allocation2] sm:$0x3]
    %v113 = vpack.c.bf16 %v112, %v112
    %v114 = vld [vmem:[#allocation5] sm:$0xff]
    %v115 = vld [vmem:[#allocation5 + $0x8] sm:$0xff]
    %v116 = vld [vmem:[#allocation5 + $0x10] sm:$0xff]
    %v117 = vld [vmem:[#allocation5 + $0x18] sm:$0xff]
    %v118 = vld [vmem:[#allocation5 + $0x20] sm:$0xff]
    %v119 = vld [vmem:[#allocation5 + $0x28] sm:$0xff]
    %v120 = vld [vmem:[#allocation5 + $0x30] sm:$0xff]
    %v121 = vld [vmem:[#allocation5 + $0x38] sm:$0xff]
    %v122 = vld [vmem:[#allocation5 + $0x40] sm:$0xff]
    %v123 = vld [vmem:[#allocation5 + $0x48] sm:$0xff]
    %v124 = vld [vmem:[#allocation5 + $0x50] sm:$0xff]
    %v125 = vld [vmem:[#allocation5 + $0x58] sm:$0xff]
    %v126 = vld [vmem:[#allocation5 + $0x60] sm:$0xff]
    %v127 = vld [vmem:[#allocation5 + $0x68] sm:$0xff]
    %v128 = vld [vmem:[#allocation5 + $0x70] sm:$0xff]
    %v129 = vld [vmem:[#allocation5 + $0x78] sm:$0xff]
    %v130 = vld [vmem:[#allocation7] sm:$0xff]
    %v132 = vlaneseq
    %v133 = vshrl.u32 %v132, 7
    %v134 = vsub.s32 0, %v133
    %v135 = vrot.slane %v130, %v134
    %v136 = vlaneseq
    %v137 = vshrl.u32 %v136, 7
    %v138 = vsub.s32 1, %v137
    %v139 = vrot.slane %v130, %v138
    %v140 = vlaneseq
    %v141 = vshrl.u32 %v140, 7
    %v142 = vsub.s32 2, %v141
    %v143 = vrot.slane %v130, %v142
    %v144 = vlaneseq
    %v145 = vshrl.u32 %v144, 7
    %v146 = vsub.s32 3, %v145
    %v147 = vrot.slane %v130, %v146
    %v148 = vlaneseq
    %v149 = vshrl.u32 %v148, 7
    %v150 = vsub.s32 4, %v149
    %v151 = vrot.slane %v130, %v150
    %v152 = vlaneseq
    %v153 = vshrl.u32 %v152, 7
    %v154 = vsub.s32 5, %v153
    %v155 = vrot.slane %v130, %v154
    %v156 = vlaneseq
    %v157 = vshrl.u32 %v156, 7
    %v158 = vsub.s32 6, %v157
    %v159 = vrot.slane %v130, %v158
    %v160 = vlaneseq
    %v161 = vshrl.u32 %v160, 7
    %v162 = vsub.s32 7, %v161
    %v163 = vrot.slane %v130, %v162
    %v188 = vunpack.c.l.b16 %v114
    %v189 = vunpack.c.h.b16 %v114
    %v190 = vunpack.c.l.b16 %v115
    %v191 = vunpack.c.h.b16 %v115
    %v192 = vunpack.c.l.b16 %v116
    %v193 = vunpack.c.h.b16 %v116
    %v194 = vunpack.c.l.b16 %v117
    %v195 = vunpack.c.h.b16 %v117
    %v196 = vunpack.c.l.b16 %v118
    %v197 = vunpack.c.h.b16 %v118
    %v198 = vunpack.c.l.b16 %v119
    %v199 = vunpack.c.h.b16 %v119
    %v200 = vunpack.c.l.b16 %v120
    %v201 = vunpack.c.h.b16 %v120
    %v202 = vunpack.c.l.b16 %v121
    %v203 = vunpack.c.h.b16 %v121
    %v204 = vunpack.c.l.b16 %v122
    %v205 = vunpack.c.h.b16 %v122
    %v206 = vunpack.c.l.b16 %v123
    %v207 = vunpack.c.h.b16 %v123
    %v208 = vunpack.c.l.b16 %v124
    %v209 = vunpack.c.h.b16 %v124
    %v210 = vunpack.c.l.b16 %v125
    %v211 = vunpack.c.h.b16 %v125
    %v212 = vunpack.c.l.b16 %v126
    %v213 = vunpack.c.h.b16 %v126
    %v214 = vunpack.c.l.b16 %v127
    %v215 = vunpack.c.h.b16 %v127
    %v216 = vunpack.c.l.b16 %v128
    %v217 = vunpack.c.h.b16 %v128
    %v218 = vunpack.c.l.b16 %v129
    %v219 = vunpack.c.h.b16 %v129
    %v220 = vpack.c.b16 %v196, %v188
    %v221 = vpack.c.b16 %v197, %v189
    %v222 = vpack.c.b16 %v198, %v190
    %v223 = vpack.c.b16 %v199, %v191
    %v224 = vpack.c.b16 %v200, %v192
    %v225 = vpack.c.b16 %v201, %v193
    %v226 = vpack.c.b16 %v202, %v194
    %v227 = vpack.c.b16 %v203, %v195
    %v228 = vpack.c.b16 %v212, %v204
    %v229 = vpack.c.b16 %v213, %v205
    %v230 = vpack.c.b16 %v214, %v206
    %v231 = vpack.c.b16 %v215, %v207
    %v232 = vpack.c.b16 %v216, %v208
    %v233 = vpack.c.b16 %v217, %v209
    %v234 = vpack.c.b16 %v218, %v210
    %v235 = vpack.c.b16 %v219, %v211
    %vm252 = vcmask 261120
    %v254 = vsel %vm252, %v113, 0
    %256 = vmatprep.subr.bf16.mxu0 %v221
    %257 = vmatpush1.bf16.msra.mxu0 %v220
    %258 = vmatprep.subr.bf16.mxu0 %v229
    %259 = vmatpush1.bf16.msra.mxu0 %v228
    %260 = vmatprep.subr.bf16.mxu0 0
    %261 = vmatpush1.bf16.msra.mxu0 0
    %262 = vmatprep.subr.bf16.mxu0 0
    %263 = vmatpush1.bf16.msra.mxu0 0
    %264 = vmatprep.subr.bf16.mxu0 0
    %265 = vmatpush1.bf16.msra.mxu0 0
    %266 = vmatprep.subr.bf16.mxu0 0
    %267 = vmatpush1.bf16.msra.mxu0 0
    %268 = vmatprep.subr.bf16.mxu0 0
    %269 = vmatpush1.bf16.msra.mxu0 0
    %270 = vmatprep.subr.bf16.mxu0 0
    %271 = vmatpush1.bf16.msra.mxu0 0
    %272 = vmatprep.subr.bf16.mxu0 0
    %273 = vmatpush1.bf16.msra.mxu0 0
    %274 = vmatprep.subr.bf16.mxu0 0
    %275 = vmatpush1.bf16.msra.mxu0 0
    %276 = vmatprep.subr.bf16.mxu0 0
    %277 = vmatpush1.bf16.msra.mxu0 0
    %278 = vmatprep.subr.bf16.mxu0 0
    %279 = vmatpush1.bf16.msra.mxu0 0
    %280 = vmatprep.subr.bf16.mxu0 0
    %281 = vmatpush1.bf16.msra.mxu0 0
    %282 = vmatprep.subr.bf16.mxu0 0
    %283 = vmatpush1.bf16.msra.mxu0 0
    %284 = vmatprep.subr.bf16.mxu0 0
    %285 = vmatpush1.bf16.msra.mxu0 0
    %286 = vmatprep.subr.bf16.mxu0 0
    %287 = vmatpush1.bf16.msra.mxu0 0
    %288 = vmatprep.mubr.bf16.mxu0 0
    %289 = vmatmul.mubr.bf16.gmra.mrb[0].mxu0 %v254
    %v290 = vpop.f32.mrb[0].mxu0
    %v291 = vadd.f32 %v135, %v290
    %v292 = vpop.f32.mrb[0].mxu0
    %v293 = vadd.f32 %v139, %v292
    %v294 = vpop.f32.mrb[0].mxu0
    %v295 = vpop.f32.mrb[0].mxu0
    %296 = vdwg.mxu0
    %297 = vmatprep.subr.bf16.mxu0 %v223
    %298 = vmatpush1.bf16.msra.mxu0 %v222
    %299 = vmatprep.subr.bf16.mxu0 %v231
    %300 = vmatpush1.bf16.msra.mxu0 %v230
    %301 = vmatprep.subr.bf16.mxu0 0
    %302 = vmatpush1.bf16.msra.mxu0 0
    %303 = vmatprep.subr.bf16.mxu0 0
    %304 = vmatpush1.bf16.msra.mxu0 0
    %305 = vmatprep.subr.bf16.mxu0 0
    %306 = vmatpush1.bf16.msra.mxu0 0
    %307 = vmatprep.subr.bf16.mxu0 0
    %308 = vmatpush1.bf16.msra.mxu0 0
    %309 = vmatprep.subr.bf16.mxu0 0
    %310 = vmatpush1.bf16.msra.mxu0 0
    %311 = vmatprep.subr.bf16.mxu0 0
    %312 = vmatpush1.bf16.msra.mxu0 0
    %313 = vmatprep.subr.bf16.mxu0 0
    %314 = vmatpush1.bf16.msra.mxu0 0
    %315 = vmatprep.subr.bf16.mxu0 0
    %316 = vmatpush1.bf16.msra.mxu0 0
    %317 = vmatprep.subr.bf16.mxu0 0
    %318 = vmatpush1.bf16.msra.mxu0 0
    %319 = vmatprep.subr.bf16.mxu0 0
    %320 = vmatpush1.bf16.msra.mxu0 0
    %321 = vmatprep.subr.bf16.mxu0 0
    %322 = vmatpush1.bf16.msra.mxu0 0
    %323 = vmatprep.subr.bf16.mxu0 0
    %324 = vmatpush1.bf16.msra.mxu0 0
    %325 = vmatprep.subr.bf16.mxu0 0
    %326 = vmatpush1.bf16.msra.mxu0 0
    %327 = vmatprep.subr.bf16.mxu0 0
    %328 = vmatpush1.bf16.msra.mxu0 0
    %329 = vmatprep.mubr.bf16.mxu0 0
    %330 = vmatmul.mubr.bf16.gmra.mrb[0].mxu0 %v254
    %v331 = vpop.f32.mrb[0].mxu0
    %v332 = vadd.f32 %v143, %v331
    %v333 = vpop.f32.mrb[0].mxu0
    %v334 = vadd.f32 %v147, %v333
    %v335 = vpop.f32.mrb[0].mxu0
    %v336 = vpop.f32.mrb[0].mxu0
    %337 = vdwg.mxu0
    %338 = vmatprep.subr.bf16.mxu0 %v225
    %339 = vmatpush1.bf16.msra.mxu0 %v224
    %340 = vmatprep.subr.bf16.mxu0 %v233
    %341 = vmatpush1.bf16.msra.mxu0 %v232
    %342 = vmatprep.subr.bf16.mxu0 0
    %343 = vmatpush1.bf16.msra.mxu0 0
    %344 = vmatprep.subr.bf16.mxu0 0
    %345 = vmatpush1.bf16.msra.mxu0 0
    %346 = vmatprep.subr.bf16.mxu0 0
    %347 = vmatpush1.bf16.msra.mxu0 0
    %348 = vmatprep.subr.bf16.mxu0 0
    %349 = vmatpush1.bf16.msra.mxu0 0
    %350 = vmatprep.subr.bf16.mxu0 0
    %351 = vmatpush1.bf16.msra.mxu0 0
    %352 = vmatprep.subr.bf16.mxu0 0
    %353 = vmatpush1.bf16.msra.mxu0 0
    %354 = vmatprep.subr.bf16.mxu0 0
    %355 = vmatpush1.bf16.msra.mxu0 0
    %356 = vmatprep.subr.bf16.mxu0 0
    %357 = vmatpush1.bf16.msra.mxu0 0
    %358 = vmatprep.subr.bf16.mxu0 0
    %359 = vmatpush1.bf16.msra.mxu0 0
    %360 = vmatprep.subr.bf16.mxu0 0
    %361 = vmatpush1.bf16.msra.mxu0 0
    %362 = vmatprep.subr.bf16.mxu0 0
    %363 = vmatpush1.bf16.msra.mxu0 0
    %364 = vmatprep.subr.bf16.mxu0 0
    %365 = vmatpush1.bf16.msra.mxu0 0
    %366 = vmatprep.subr.bf16.mxu0 0
    %367 = vmatpush1.bf16.msra.mxu0 0
    %368 = vmatprep.subr.bf16.mxu0 0
    %369 = vmatpush1.bf16.msra.mxu0 0
    %370 = vmatprep.mubr.bf16.mxu0 0
    %371 = vmatmul.mubr.bf16.gmra.mrb[0].mxu0 %v254
    %v372 = vpop.f32.mrb[0].mxu0
    %v373 = vadd.f32 %v151, %v372
    %v374 = vpop.f32.mrb[0].mxu0
    %v375 = vadd.f32 %v155, %v374
    %v376 = vpop.f32.mrb[0].mxu0
    %v377 = vpop.f32.mrb[0].mxu0
    %378 = vdwg.mxu0
    %379 = vmatprep.subr.bf16.mxu0 %v227
    %380 = vmatpush1.bf16.msra.mxu0 %v226
    %381 = vmatprep.subr.bf16.mxu0 %v235
    %382 = vmatpush1.bf16.msra.mxu0 %v234
    %383 = vmatprep.subr.bf16.mxu0 0
    %384 = vmatpush1.bf16.msra.mxu0 0
    %385 = vmatprep.subr.bf16.mxu0 0
    %386 = vmatpush1.bf16.msra.mxu0 0
    %387 = vmatprep.subr.bf16.mxu0 0
    %388 = vmatpush1.bf16.msra.mxu0 0
    %389 = vmatprep.subr.bf16.mxu0 0
    %390 = vmatpush1.bf16.msra.mxu0 0
    %391 = vmatprep.subr.bf16.mxu0 0
    %392 = vmatpush1.bf16.msra.mxu0 0
    %393 = vmatprep.subr.bf16.mxu0 0
    %394 = vmatpush1.bf16.msra.mxu0 0
    %395 = vmatprep.subr.bf16.mxu0 0
    %396 = vmatpush1.bf16.msra.mxu0 0
    %397 = vmatprep.subr.bf16.mxu0 0
    %398 = vmatpush1.bf16.msra.mxu0 0
    %399 = vmatprep.subr.bf16.mxu0 0
    %400 = vmatpush1.bf16.msra.mxu0 0
    %401 = vmatprep.subr.bf16.mxu0 0
    %402 = vmatpush1.bf16.msra.mxu0 0
    %403 = vmatprep.subr.bf16.mxu0 0
    %404 = vmatpush1.bf16.msra.mxu0 0
    %405 = vmatprep.subr.bf16.mxu0 0
    %406 = vmatpush1.bf16.msra.mxu0 0
    %407 = vmatprep.subr.bf16.mxu0 0
    %408 = vmatpush1.bf16.msra.mxu0 0
    %409 = vmatprep.subr.bf16.mxu0 0
    %410 = vmatpush1.bf16.msra.mxu0 0
    %411 = vmatprep.mubr.bf16.mxu0 0
    %412 = vmatmul.mubr.bf16.gmra.mrb[0].mxu0 %v254
    %v413 = vpop.f32.mrb[0].mxu0
    %v414 = vadd.f32 %v159, %v413
    %v415 = vpop.f32.mrb[0].mxu0
    %v416 = vadd.f32 %v163, %v415
    %v417 = vpop.f32.mrb[0].mxu0
    %v418 = vpop.f32.mrb[0].mxu0
    %419 = vdwg.mxu0
    %v420 = vmax.f32 %v291, 0.0
    %v421 = vmax.f32 %v293, 0.0
    %v422 = vmax.f32 %v332, 0.0
    %v423 = vmax.f32 %v334, 0.0
    %v424 = vmax.f32 %v373, 0.0
    %v425 = vmax.f32 %v375, 0.0
    %v426 = vmax.f32 %v414, 0.0
    %v427 = vmax.f32 %v416, 0.0
    %v428 = vpack.c.bf16 %v420, %v420
    %v429 = vpack.c.bf16 %v421, %v421
    %v430 = vpack.c.bf16 %v422, %v422
    %v431 = vpack.c.bf16 %v423, %v423
    %v432 = vpack.c.bf16 %v424, %v424
    %v433 = vpack.c.bf16 %v425, %v425
    %v434 = vpack.c.bf16 %v426, %v426
    %v435 = vpack.c.bf16 %v427, %v427
    %v436 = vld [vmem:[#allocation8] sm:$0xff]
    %v437 = vld [vmem:[#allocation8 + $0x8] sm:$0xf]
    %v438 = vld [vmem:[#allocation8 + $0xc] sm:$0xff]
    %v439 = vld [vmem:[#allocation8 + $0x14] sm:$0xf]
    %v440 = vld [vmem:[#allocation8 + $0x18] sm:$0xff]
    %v441 = vld [vmem:[#allocation8 + $0x20] sm:$0xf]
    %v442 = vld [vmem:[#allocation8 + $0x24] sm:$0xff]
    %v443 = vld [vmem:[#allocation8 + $0x2c] sm:$0xf]
    %v444 = vld [vmem:[#allocation8 + $0x30] sm:$0xff]
    %v445 = vld [vmem:[#allocation8 + $0x38] sm:$0xf]
    %v446 = vld [vmem:[#allocation8 + $0x3c] sm:$0xff]
    %v447 = vld [vmem:[#allocation8 + $0x44] sm:$0xf]
    %v448 = vld [vmem:[#allocation8 + $0x48] sm:$0xff]
    %v449 = vld [vmem:[#allocation8 + $0x50] sm:$0xf]
    %v450 = vld [vmem:[#allocation8 + $0x54] sm:$0xff]
    %v451 = vld [vmem:[#allocation8 + $0x5c] sm:$0xf]
    %v452 = vld [vmem:[#allocation8 + $0x60] sm:$0xff]
    %v453 = vld [vmem:[#allocation8 + $0x68] sm:$0xf]
    %v454 = vld [vmem:[#allocation8 + $0x6c] sm:$0xff]
    %v455 = vld [vmem:[#allocation8 + $0x74] sm:$0xf]
    %v456 = vld [vmem:[#allocation8 + $0x78] sm:$0xff]
    %v457 = vld [vmem:[#allocation8 + $0x80] sm:$0xf]
    %v458 = vld [vmem:[#allocation8 + $0x84] sm:$0xff]
    %v459 = vld [vmem:[#allocation8 + $0x8c] sm:$0xf]
    %v460 = vld [vmem:[#allocation8 + $0x90] sm:$0xff]
    %v461 = vld [vmem:[#allocation8 + $0x98] sm:$0xf]
    %v462 = vld [vmem:[#allocation8 + $0x9c] sm:$0xff]
    %v463 = vld [vmem:[#allocation8 + $0xa4] sm:$0xf]
    %v464 = vld [vmem:[#allocation8 + $0xa8] sm:$0xff]
    %v465 = vld [vmem:[#allocation8 + $0xb0] sm:$0xf]
    %v466 = vld [vmem:[#allocation8 + $0xb4] sm:$0xff]
    %v467 = vld [vmem:[#allocation8 + $0xbc] sm:$0xf]
    %v468 = vld [vmem:[#allocation8 + $0xc0] sm:$0xff]
    %v469 = vld [vmem:[#allocation8 + $0xc8] sm:$0xf]
    %v470 = vld [vmem:[#allocation8 + $0xcc] sm:$0xff]
    %v471 = vld [vmem:[#allocation8 + $0xd4] sm:$0xf]
    %v472 = vld [vmem:[#allocation8 + $0xd8] sm:$0xff]
    %v473 = vld [vmem:[#allocation8 + $0xe0] sm:$0xf]
    %v474 = vld [vmem:[#allocation8 + $0xe4] sm:$0xff]
    %v475 = vld [vmem:[#allocation8 + $0xec] sm:$0xf]
    %v476 = vld [vmem:[#allocation8 + $0xf0] sm:$0xff]
    %v477 = vld [vmem:[#allocation8 + $0xf8] sm:$0xf]
    %v478 = vld [vmem:[#allocation8 + $0xfc] sm:$0xff]
    %v479 = vld [vmem:[#allocation8 + $0x104] sm:$0xf]
    %v480 = vld [vmem:[#allocation8 + $0x108] sm:$0xff]
    %v481 = vld [vmem:[#allocation8 + $0x110] sm:$0xf]
    %v482 = vld [vmem:[#allocation8 + $0x114] sm:$0xff]
    %v483 = vld [vmem:[#allocation8 + $0x11c] sm:$0xf]
    %v484 = vld [vmem:[#allocation8 + $0x120] sm:$0xff]
    %v485 = vld [vmem:[#allocation8 + $0x128] sm:$0xf]
    %v486 = vld [vmem:[#allocation8 + $0x12c] sm:$0xff]
    %v487 = vld [vmem:[#allocation8 + $0x134] sm:$0xf]
    %v488 = vld [vmem:[#allocation8 + $0x138] sm:$0xff]
    %v489 = vld [vmem:[#allocation8 + $0x140] sm:$0xf]
    %v490 = vld [vmem:[#allocation8 + $0x144] sm:$0xff]
    %v491 = vld [vmem:[#allocation8 + $0x14c] sm:$0xf]
    %v492 = vld [vmem:[#allocation8 + $0x150] sm:$0xff]
    %v493 = vld [vmem:[#allocation8 + $0x158] sm:$0xf]
    %v494 = vld [vmem:[#allocation8 + $0x15c] sm:$0xff]
    %v495 = vld [vmem:[#allocation8 + $0x164] sm:$0xf]
    %v496 = vld [vmem:[#allocation8 + $0x168] sm:$0xff]
    %v497 = vld [vmem:[#allocation8 + $0x170] sm:$0xf]
    %v498 = vld [vmem:[#allocation8 + $0x174] sm:$0xff]
    %v499 = vld [vmem:[#allocation8 + $0x17c] sm:$0xf]
    %v500 = vld [vmem:[#allocation8 + $0x180] sm:$0xff]
    %v501 = vld [vmem:[#allocation8 + $0x188] sm:$0xf]
    %v502 = vld [vmem:[#allocation8 + $0x18c] sm:$0xff]
    %v503 = vld [vmem:[#allocation8 + $0x194] sm:$0xf]
    %v504 = vld [vmem:[#allocation8 + $0x198] sm:$0xff]
    %v505 = vld [vmem:[#allocation8 + $0x1a0] sm:$0xf]
    %v506 = vld [vmem:[#allocation8 + $0x1a4] sm:$0xff]
    %v507 = vld [vmem:[#allocation8 + $0x1ac] sm:$0xf]
    %v508 = vld [vmem:[#allocation8 + $0x1b0] sm:$0xff]
    %v509 = vld [vmem:[#allocation8 + $0x1b8] sm:$0xf]
    %v510 = vld [vmem:[#allocation8 + $0x1bc] sm:$0xff]
    %v511 = vld [vmem:[#allocation8 + $0x1c4] sm:$0xf]
    %v512 = vld [vmem:[#allocation8 + $0x1c8] sm:$0xff]
    %v513 = vld [vmem:[#allocation8 + $0x1d0] sm:$0xf]
    %v514 = vld [vmem:[#allocation8 + $0x1d4] sm:$0xff]
    %v515 = vld [vmem:[#allocation8 + $0x1dc] sm:$0xf]
    %v516 = vld [vmem:[#allocation8 + $0x1e0] sm:$0xff]
    %v517 = vld [vmem:[#allocation8 + $0x1e8] sm:$0xf]
    %v518 = vld [vmem:[#allocation8 + $0x1ec] sm:$0xff]
    %v519 = vld [vmem:[#allocation8 + $0x1f4] sm:$0xf]
    %v520 = vld [vmem:[#allocation8 + $0x1f8] sm:$0xff]
    %v521 = vld [vmem:[#allocation8 + $0x200] sm:$0xf]
    %v522 = vld [vmem:[#allocation8 + $0x204] sm:$0xff]
    %v523 = vld [vmem:[#allocation8 + $0x20c] sm:$0xf]
    %v524 = vld [vmem:[#allocation8 + $0x210] sm:$0xff]
    %v525 = vld [vmem:[#allocation8 + $0x218] sm:$0xf]
    %v526 = vld [vmem:[#allocation8 + $0x21c] sm:$0xff]
    %v527 = vld [vmem:[#allocation8 + $0x224] sm:$0xf]
    %v528 = vld [vmem:[#allocation8 + $0x228] sm:$0xff]
    %v529 = vld [vmem:[#allocation8 + $0x230] sm:$0xf]
    %v530 = vld [vmem:[#allocation8 + $0x234] sm:$0xff]
    %v531 = vld [vmem:[#allocation8 + $0x23c] sm:$0xf]
    %v532 = vld [vmem:[#allocation8 + $0x240] sm:$0xff]
    %v533 = vld [vmem:[#allocation8 + $0x248] sm:$0xf]
    %v534 = vld [vmem:[#allocation8 + $0x24c] sm:$0xff]
    %v535 = vld [vmem:[#allocation8 + $0x254] sm:$0xf]
    %v536 = vld [vmem:[#allocation8 + $0x258] sm:$0xff]
    %v537 = vld [vmem:[#allocation8 + $0x260] sm:$0xf]
    %v538 = vld [vmem:[#allocation8 + $0x264] sm:$0xff]
    %v539 = vld [vmem:[#allocation8 + $0x26c] sm:$0xf]
    %v540 = vld [vmem:[#allocation8 + $0x270] sm:$0xff]
    %v541 = vld [vmem:[#allocation8 + $0x278] sm:$0xf]
    %v542 = vld [vmem:[#allocation8 + $0x27c] sm:$0xff]
    %v543 = vld [vmem:[#allocation8 + $0x284] sm:$0xf]
    %v544 = vld [vmem:[#allocation8 + $0x288] sm:$0xff]
    %v545 = vld [vmem:[#allocation8 + $0x290] sm:$0xf]
    %v546 = vld [vmem:[#allocation8 + $0x294] sm:$0xff]
    %v547 = vld [vmem:[#allocation8 + $0x29c] sm:$0xf]
    %v548 = vld [vmem:[#allocation8 + $0x2a0] sm:$0xff]
    %v549 = vld [vmem:[#allocation8 + $0x2a8] sm:$0xf]
    %v550 = vld [vmem:[#allocation8 + $0x2ac] sm:$0xff]
    %v551 = vld [vmem:[#allocation8 + $0x2b4] sm:$0xf]
    %v552 = vld [vmem:[#allocation8 + $0x2b8] sm:$0xff]
    %v553 = vld [vmem:[#allocation8 + $0x2c0] sm:$0xf]
    %v554 = vld [vmem:[#allocation8 + $0x2c4] sm:$0xff]
    %v555 = vld [vmem:[#allocation8 + $0x2cc] sm:$0xf]
    %v556 = vld [vmem:[#allocation8 + $0x2d0] sm:$0xff]
    %v557 = vld [vmem:[#allocation8 + $0x2d8] sm:$0xf]
    %v558 = vld [vmem:[#allocation8 + $0x2dc] sm:$0xff]
    %v559 = vld [vmem:[#allocation8 + $0x2e4] sm:$0xf]
    %v560 = vld [vmem:[#allocation8 + $0x2e8] sm:$0xff]
    %v561 = vld [vmem:[#allocation8 + $0x2f0] sm:$0xf]
    %v562 = vld [vmem:[#allocation8 + $0x2f4] sm:$0xff]
    %v563 = vld [vmem:[#allocation8 + $0x2fc] sm:$0xf]
    %v564 = vld [vmem:[%s4] sm:$0x7]
    %v566 = vlaneseq
    %v567 = vshrl.u32 %v566, 7
    %v568 = vsub.s32 0, %v567
    %v569 = vrot.slane %v564, %v568
    %v570 = vlaneseq
    %v571 = vshrl.u32 %v570, 7
    %v572 = vsub.s32 1, %v571
    %v573 = vrot.slane %v564, %v572
    %v574 = vlaneseq
    %v575 = vshrl.u32 %v574, 7
    %v576 = vsub.s32 2, %v575
    %v577 = vrot.slane %v564, %v576
    %v709 = vunpack.c.l.b16 %v436
    %v710 = vunpack.c.h.b16 %v436
    %v711 = vunpack.c.l.b16 %v437
    %v712 = vunpack.c.l.b16 %v438
    %v713 = vunpack.c.h.b16 %v438
    %v714 = vunpack.c.l.b16 %v439
    %v715 = vunpack.c.l.b16 %v440
    %v716 = vunpack.c.h.b16 %v440
    %v717 = vunpack.c.l.b16 %v441
    %v718 = vunpack.c.l.b16 %v442
    %v719 = vunpack.c.h.b16 %v442
    %v720 = vunpack.c.l.b16 %v443
    %v721 = vunpack.c.l.b16 %v444
    %v722 = vunpack.c.h.b16 %v444
    %v723 = vunpack.c.l.b16 %v445
    %v724 = vunpack.c.l.b16 %v446
    %v725 = vunpack.c.h.b16 %v446
    %v726 = vunpack.c.l.b16 %v447
    %v727 = vunpack.c.l.b16 %v448
    %v728 = vunpack.c.h.b16 %v448
    %v729 = vunpack.c.l.b16 %v449
    %v730 = vunpack.c.l.b16 %v450
    %v731 = vunpack.c.h.b16 %v450
    %v732 = vunpack.c.l.b16 %v451
    %v733 = vunpack.c.l.b16 %v452
    %v734 = vunpack.c.h.b16 %v452
    %v735 = vunpack.c.l.b16 %v453
    %v736 = vunpack.c.l.b16 %v454
    %v737 = vunpack.c.h.b16 %v454
    %v738 = vunpack.c.l.b16 %v455
    %v739 = vunpack.c.l.b16 %v456
    %v740 = vunpack.c.h.b16 %v456
    %v741 = vunpack.c.l.b16 %v457
    %v742 = vunpack.c.l.b16 %v458
    %v743 = vunpack.c.h.b16 %v458
    %v744 = vunpack.c.l.b16 %v459
    %v745 = vunpack.c.l.b16 %v460
    %v746 = vunpack.c.h.b16 %v460
    %v747 = vunpack.c.l.b16 %v461
    %v748 = vunpack.c.l.b16 %v462
    %v749 = vunpack.c.h.b16 %v462
    %v750 = vunpack.c.l.b16 %v463
    %v751 = vunpack.c.l.b16 %v464
    %v752 = vunpack.c.h.b16 %v464
    %v753 = vunpack.c.l.b16 %v465
    %v754 = vunpack.c.l.b16 %v466
    %v755 = vunpack.c.h.b16 %v466
    %v756 = vunpack.c.l.b16 %v467
    %v757 = vunpack.c.l.b16 %v468
    %v758 = vunpack.c.h.b16 %v468
    %v759 = vunpack.c.l.b16 %v469
    %v760 = vunpack.c.l.b16 %v470
    %v761 = vunpack.c.h.b16 %v470
    %v762 = vunpack.c.l.b16 %v471
    %v763 = vunpack.c.l.b16 %v472
    %v764 = vunpack.c.h.b16 %v472
    %v765 = vunpack.c.l.b16 %v473
    %v766 = vunpack.c.l.b16 %v474
    %v767 = vunpack.c.h.b16 %v474
    %v768 = vunpack.c.l.b16 %v475
    %v769 = vunpack.c.l.b16 %v476
    %v770 = vunpack.c.h.b16 %v476
    %v771 = vunpack.c.l.b16 %v477
    %v772 = vunpack.c.l.b16 %v478
    %v773 = vunpack.c.h.b16 %v478
    %v774 = vunpack.c.l.b16 %v479
    %v775 = vunpack.c.l.b16 %v480
    %v776 = vunpack.c.h.b16 %v480
    %v777 = vunpack.c.l.b16 %v481
    %v778 = vunpack.c.l.b16 %v482
    %v779 = vunpack.c.h.b16 %v482
    %v780 = vunpack.c.l.b16 %v483
    %v781 = vunpack.c.l.b16 %v484
    %v782 = vunpack.c.h.b16 %v484
    %v783 = vunpack.c.l.b16 %v485
    %v784 = vunpack.c.l.b16 %v486
    %v785 = vunpack.c.h.b16 %v486
    %v786 = vunpack.c.l.b16 %v487
    %v787 = vunpack.c.l.b16 %v488
    %v788 = vunpack.c.h.b16 %v488
    %v789 = vunpack.c.l.b16 %v489
    %v790 = vunpack.c.l.b16 %v490
    %v791 = vunpack.c.h.b16 %v490
    %v792 = vunpack.c.l.b16 %v491
    %v793 = vunpack.c.l.b16 %v492
    %v794 = vunpack.c.h.b16 %v492
    %v795 = vunpack.c.l.b16 %v493
    %v796 = vunpack.c.l.b16 %v494
    %v797 = vunpack.c.h.b16 %v494
    %v798 = vunpack.c.l.b16 %v495
    %v799 = vunpack.c.l.b16 %v496
    %v800 = vunpack.c.h.b16 %v496
    %v801 = vunpack.c.l.b16 %v497
    %v802 = vunpack.c.l.b16 %v498
    %v803 = vunpack.c.h.b16 %v498
    %v804 = vunpack.c.l.b16 %v499
    %v805 = vunpack.c.l.b16 %v500
    %v806 = vunpack.c.h.b16 %v500
    %v807 = vunpack.c.l.b16 %v501
    %v808 = vunpack.c.l.b16 %v502
    %v809 = vunpack.c.h.b16 %v502
    %v810 = vunpack.c.l.b16 %v503
    %v811 = vunpack.c.l.b16 %v504
    %v812 = vunpack.c.h.b16 %v504
    %v813 = vunpack.c.l.b16 %v505
    %v814 = vunpack.c.l.b16 %v506
    %v815 = vunpack.c.h.b16 %v506
    %v816 = vunpack.c.l.b16 %v507
    %v817 = vunpack.c.l.b16 %v508
    %v818 = vunpack.c.h.b16 %v508
    %v819 = vunpack.c.l.b16 %v509
    %v820 = vunpack.c.l.b16 %v510
    %v821 = vunpack.c.h.b16 %v510
    %v822 = vunpack.c.l.b16 %v511
    %v823 = vunpack.c.l.b16 %v512
    %v824 = vunpack.c.h.b16 %v512
    %v825 = vunpack.c.l.b16 %v513
    %v826 = vunpack.c.l.b16 %v514
    %v827 = vunpack.c.h.b16 %v514
    %v828 = vunpack.c.l.b16 %v515
    %v829 = vunpack.c.l.b16 %v516
    %v830 = vunpack.c.h.b16 %v516
    %v831 = vunpack.c.l.b16 %v517
    %v832 = vunpack.c.l.b16 %v518
    %v833 = vunpack.c.h.b16 %v518
    %v834 = vunpack.c.l.b16 %v519
    %v835 = vunpack.c.l.b16 %v520
    %v836 = vunpack.c.h.b16 %v520
    %v837 = vunpack.c.l.b16 %v521
    %v838 = vunpack.c.l.b16 %v522
    %v839 = vunpack.c.h.b16 %v522
    %v840 = vunpack.c.l.b16 %v523
    %v841 = vunpack.c.l.b16 %v524
    %v842 = vunpack.c.h.b16 %v524
    %v843 = vunpack.c.l.b16 %v525
    %v844 = vunpack.c.l.b16 %v526
    %v845 = vunpack.c.h.b16 %v526
    %v846 = vunpack.c.l.b16 %v527
    %v847 = vunpack.c.l.b16 %v528
    %v848 = vunpack.c.h.b16 %v528
    %v849 = vunpack.c.l.b16 %v529
    %v850 = vunpack.c.l.b16 %v530
    %v851 = vunpack.c.h.b16 %v530
    %v852 = vunpack.c.l.b16 %v531
    %v853 = vunpack.c.l.b16 %v532
    %v854 = vunpack.c.h.b16 %v532
    %v855 = vunpack.c.l.b16 %v533
    %v856 = vunpack.c.l.b16 %v534
    %v857 = vunpack.c.h.b16 %v534
    %v858 = vunpack.c.l.b16 %v535
    %v859 = vunpack.c.l.b16 %v536
    %v860 = vunpack.c.h.b16 %v536
    %v861 = vunpack.c.l.b16 %v537
    %v862 = vunpack.c.l.b16 %v538
    %v863 = vunpack.c.h.b16 %v538
    %v864 = vunpack.c.l.b16 %v539
    %v865 = vunpack.c.l.b16 %v540
    %v866 = vunpack.c.h.b16 %v540
    %v867 = vunpack.c.l.b16 %v541
    %v868 = vunpack.c.l.b16 %v542
    %v869 = vunpack.c.h.b16 %v542
    %v870 = vunpack.c.l.b16 %v543
    %v871 = vunpack.c.l.b16 %v544
    %v872 = vunpack.c.h.b16 %v544
    %v873 = vunpack.c.l.b16 %v545
    %v874 = vunpack.c.l.b16 %v546
    %v875 = vunpack.c.h.b16 %v546
    %v876 = vunpack.c.l.b16 %v547
    %v877 = vunpack.c.l.b16 %v548
    %v878 = vunpack.c.h.b16 %v548
    %v879 = vunpack.c.l.b16 %v549
    %v880 = vunpack.c.l.b16 %v550
    %v881 = vunpack.c.h.b16 %v550
    %v882 = vunpack.c.l.b16 %v551
    %v883 = vunpack.c.l.b16 %v552
    %v884 = vunpack.c.h.b16 %v552
    %v885 = vunpack.c.l.b16 %v553
    %v886 = vunpack.c.l.b16 %v554
    %v887 = vunpack.c.h.b16 %v554
    %v888 = vunpack.c.l.b16 %v555
    %v889 = vunpack.c.l.b16 %v556
    %v890 = vunpack.c.h.b16 %v556
    %v891 = vunpack.c.l.b16 %v557
    %v892 = vunpack.c.l.b16 %v558
    %v893 = vunpack.c.h.b16 %v558
    %v894 = vunpack.c.l.b16 %v559
    %v895 = vunpack.c.l.b16 %v560
    %v896 = vunpack.c.h.b16 %v560
    %v897 = vunpack.c.l.b16 %v561
    %v898 = vunpack.c.l.b16 %v562
    %v899 = vunpack.c.h.b16 %v562
    %v900 = vunpack.c.l.b16 %v563
    %v901 = vpack.c.b16 %v712, %v709
    %v902 = vpack.c.b16 %v713, %v710
    %v903 = vpack.c.b16 %v714, %v711
    %v904 = vpack.c.b16 %v718, %v715
    %v905 = vpack.c.b16 %v719, %v716
    %v906 = vpack.c.b16 %v720, %v717
    %v907 = vpack.c.b16 %v724, %v721
    %v908 = vpack.c.b16 %v725, %v722
    %v909 = vpack.c.b16 %v726, %v723
    %v910 = vpack.c.b16 %v730, %v727
    %v911 = vpack.c.b16 %v731, %v728
    %v912 = vpack.c.b16 %v732, %v729
    %v913 = vpack.c.b16 %v736, %v733
    %v914 = vpack.c.b16 %v737, %v734
    %v915 = vpack.c.b16 %v738, %v735
    %v916 = vpack.c.b16 %v742, %v739
    %v917 = vpack.c.b16 %v743, %v740
    %v918 = vpack.c.b16 %v744, %v741
    %v919 = vpack.c.b16 %v748, %v745
    %v920 = vpack.c.b16 %v749, %v746
    %v921 = vpack.c.b16 %v750, %v747
    %v922 = vpack.c.b16 %v754, %v751
    %v923 = vpack.c.b16 %v755, %v752
    %v924 = vpack.c.b16 %v756, %v753
    %v925 = vpack.c.b16 %v760, %v757
    %v926 = vpack.c.b16 %v761, %v758
    %v927 = vpack.c.b16 %v762, %v759
    %v928 = vpack.c.b16 %v766, %v763
    %v929 = vpack.c.b16 %v767, %v764
    %v930 = vpack.c.b16 %v768, %v765
    %v931 = vpack.c.b16 %v772, %v769
    %v932 = vpack.c.b16 %v773, %v770
    %v933 = vpack.c.b16 %v774, %v771
    %v934 = vpack.c.b16 %v778, %v775
    %v935 = vpack.c.b16 %v779, %v776
    %v936 = vpack.c.b16 %v780, %v777
    %v937 = vpack.c.b16 %v784, %v781
    %v938 = vpack.c.b16 %v785, %v782
    %v939 = vpack.c.b16 %v786, %v783
    %v940 = vpack.c.b16 %v790, %v787
    %v941 = vpack.c.b16 %v791, %v788
    %v942 = vpack.c.b16 %v792, %v789
    %v943 = vpack.c.b16 %v796, %v793
    %v944 = vpack.c.b16 %v797, %v794
    %v945 = vpack.c.b16 %v798, %v795
    %v946 = vpack.c.b16 %v802, %v799
    %v947 = vpack.c.b16 %v803, %v800
    %v948 = vpack.c.b16 %v804, %v801
    %v949 = vpack.c.b16 %v808, %v805
    %v950 = vpack.c.b16 %v809, %v806
    %v951 = vpack.c.b16 %v810, %v807
    %v952 = vpack.c.b16 %v814, %v811
    %v953 = vpack.c.b16 %v815, %v812
    %v954 = vpack.c.b16 %v816, %v813
    %v955 = vpack.c.b16 %v820, %v817
    %v956 = vpack.c.b16 %v821, %v818
    %v957 = vpack.c.b16 %v822, %v819
    %v958 = vpack.c.b16 %v826, %v823
    %v959 = vpack.c.b16 %v827, %v824
    %v960 = vpack.c.b16 %v828, %v825
    %v961 = vpack.c.b16 %v832, %v829
    %v962 = vpack.c.b16 %v833, %v830
    %v963 = vpack.c.b16 %v834, %v831
    %v964 = vpack.c.b16 %v838, %v835
    %v965 = vpack.c.b16 %v839, %v836
    %v966 = vpack.c.b16 %v840, %v837
    %v967 = vpack.c.b16 %v844, %v841
    %v968 = vpack.c.b16 %v845, %v842
    %v969 = vpack.c.b16 %v846, %v843
    %v970 = vpack.c.b16 %v850, %v847
    %v971 = vpack.c.b16 %v851, %v848
    %v972 = vpack.c.b16 %v852, %v849
    %v973 = vpack.c.b16 %v856, %v853
    %v974 = vpack.c.b16 %v857, %v854
    %v975 = vpack.c.b16 %v858, %v855
    %v976 = vpack.c.b16 %v862, %v859
    %v977 = vpack.c.b16 %v863, %v860
    %v978 = vpack.c.b16 %v864, %v861
    %v979 = vpack.c.b16 %v868, %v865
    %v980 = vpack.c.b16 %v869, %v866
    %v981 = vpack.c.b16 %v870, %v867
    %v982 = vpack.c.b16 %v874, %v871
    %v983 = vpack.c.b16 %v875, %v872
    %v984 = vpack.c.b16 %v876, %v873
    %v985 = vpack.c.b16 %v880, %v877
    %v986 = vpack.c.b16 %v881, %v878
    %v987 = vpack.c.b16 %v882, %v879
    %v988 = vpack.c.b16 %v886, %v883
    %v989 = vpack.c.b16 %v887, %v884
    %v990 = vpack.c.b16 %v888, %v885
    %v991 = vpack.c.b16 %v892, %v889
    %v992 = vpack.c.b16 %v893, %v890
    %v993 = vpack.c.b16 %v894, %v891
    %v994 = vpack.c.b16 %v898, %v895
    %v995 = vpack.c.b16 %v899, %v896
    %v996 = vpack.c.b16 %v900, %v897
    %1093 = vmatprep.subr.bf16.mxu0 %v902
    %1094 = vmatpush1.bf16.msra.mxu0 %v901
    %1095 = vmatprep.subr.bf16.mxu0 %v905
    %1096 = vmatpush1.bf16.msra.mxu0 %v904
    %1097 = vmatprep.subr.bf16.mxu0 %v908
    %1098 = vmatpush1.bf16.msra.mxu0 %v907
    %1099 = vmatprep.subr.bf16.mxu0 %v911
    %1100 = vmatpush1.bf16.msra.mxu0 %v910
    %1101 = vmatprep.subr.bf16.mxu0 %v914
    %1102 = vmatpush1.bf16.msra.mxu0 %v913
    %1103 = vmatprep.subr.bf16.mxu0 %v917
    %1104 = vmatpush1.bf16.msra.mxu0 %v916
    %1105 = vmatprep.subr.bf16.mxu0 %v920
    %1106 = vmatpush1.bf16.msra.mxu0 %v919
    %1107 = vmatprep.subr.bf16.mxu0 %v923
    %1108 = vmatpush1.bf16.msra.mxu0 %v922
    %1109 = vmatprep.subr.bf16.mxu0 %v926
    %1110 = vmatpush1.bf16.msra.mxu0 %v925
    %1111 = vmatprep.subr.bf16.mxu0 %v929
    %1112 = vmatpush1.bf16.msra.mxu0 %v928
    %1113 = vmatprep.subr.bf16.mxu0 %v932
    %1114 = vmatpush1.bf16.msra.mxu0 %v931
    %1115 = vmatprep.subr.bf16.mxu0 %v935
    %1116 = vmatpush1.bf16.msra.mxu0 %v934
    %1117 = vmatprep.subr.bf16.mxu0 %v938
    %1118 = vmatpush1.bf16.msra.mxu0 %v937
    %1119 = vmatprep.subr.bf16.mxu0 %v941
    %1120 = vmatpush1.bf16.msra.mxu0 %v940
    %1121 = vmatprep.subr.bf16.mxu0 %v944
    %1122 = vmatpush1.bf16.msra.mxu0 %v943
    %1123 = vmatprep.subr.bf16.mxu0 %v947
    %1124 = vmatpush1.bf16.msra.mxu0 %v946
    %1125 = vmatprep.mubr.bf16.mxu0 %v429
    %1126 = vmatmul.mubr.bf16.gmra.mrb[0].mxu0 %v428
    %v1127 = vpop.f32.mrb[0].mxu0
    %v1128 = vadd.f32 %v569, %v1127
    %v1129 = vpop.f32.mrb[0].mxu0
    %v1130 = vadd.f32 %v573, %v1129
    %v1131 = vpop.f32.mrb[0].mxu0
    %v1132 = vpop.f32.mrb[0].mxu0
    %1133 = vdwg.mxu0
    %1134 = vmatprep.subr.bf16.mxu0 %v950
    %1135 = vmatpush1.bf16.msra.mxu0 %v949
    %1136 = vmatprep.subr.bf16.mxu0 %v953
    %1137 = vmatpush1.bf16.msra.mxu0 %v952
    %1138 = vmatprep.subr.bf16.mxu0 %v956
    %1139 = vmatpush1.bf16.msra.mxu0 %v955
    %1140 = vmatprep.subr.bf16.mxu0 %v959
    %1141 = vmatpush1.bf16.msra.mxu0 %v958
    %1142 = vmatprep.subr.bf16.mxu0 %v962
    %1143 = vmatpush1.bf16.msra.mxu0 %v961
    %1144 = vmatprep.subr.bf16.mxu0 %v965
    %1145 = vmatpush1.bf16.msra.mxu0 %v964
    %1146 = vmatprep.subr.bf16.mxu0 %v968
    %1147 = vmatpush1.bf16.msra.mxu0 %v967
    %1148 = vmatprep.subr.bf16.mxu0 %v971
    %1149 = vmatpush1.bf16.msra.mxu0 %v970
    %1150 = vmatprep.subr.bf16.mxu0 %v974
    %1151 = vmatpush1.bf16.msra.mxu0 %v973
    %1152 = vmatprep.subr.bf16.mxu0 %v977
    %1153 = vmatpush1.bf16.msra.mxu0 %v976
    %1154 = vmatprep.subr.bf16.mxu0 %v980
    %1155 = vmatpush1.bf16.msra.mxu0 %v979
    %1156 = vmatprep.subr.bf16.mxu0 %v983
    %1157 = vmatpush1.bf16.msra.mxu0 %v982
    %1158 = vmatprep.subr.bf16.mxu0 %v986
    %1159 = vmatpush1.bf16.msra.mxu0 %v985
    %1160 = vmatprep.subr.bf16.mxu0 %v989
    %1161 = vmatpush1.bf16.msra.mxu0 %v988
    %1162 = vmatprep.subr.bf16.mxu0 %v992
    %1163 = vmatpush1.bf16.msra.mxu0 %v991
    %1164 = vmatprep.subr.bf16.mxu0 %v995
    %1165 = vmatpush1.bf16.msra.mxu0 %v994
    %1166 = vmatprep.mubr.bf16.mxu0 %v431
    %1167 = vmatmul.mubr.bf16.gmra.mrb[0].mxu0 %v430
    %v1168 = vpop.f32.mrb[0].mxu0
    %v1169 = vadd.f32 %v1128, %v1168
    %v1170 = vpop.f32.mrb[0].mxu0
    %v1171 = vadd.f32 %v1130, %v1170
    %v1172 = vpop.f32.mrb[0].mxu0
    %v1173 = vpop.f32.mrb[0].mxu0
    %1174 = vdwg.mxu0
    %1175 = vmatprep.subr.bf16.mxu0 0
    %1176 = vmatpush1.bf16.msra.mxu0 %v903
    %1177 = vmatprep.subr.bf16.mxu0 0
    %1178 = vmatpush1.bf16.msra.mxu0 %v906
    %1179 = vmatprep.subr.bf16.mxu0 0
    %1180 = vmatpush1.bf16.msra.mxu0 %v909
    %1181 = vmatprep.subr.bf16.mxu0 0
    %1182 = vmatpush1.bf16.msra.mxu0 %v912
    %1183 = vmatprep.subr.bf16.mxu0 0
    %1184 = vmatpush1.bf16.msra.mxu0 %v915
    %1185 = vmatprep.subr.bf16.mxu0 0
    %1186 = vmatpush1.bf16.msra.mxu0 %v918
    %1187 = vmatprep.subr.bf16.mxu0 0
    %1188 = vmatpush1.bf16.msra.mxu0 %v921
    %1189 = vmatprep.subr.bf16.mxu0 0
    %1190 = vmatpush1.bf16.msra.mxu0 %v924
    %1191 = vmatprep.subr.bf16.mxu0 0
    %1192 = vmatpush1.bf16.msra.mxu0 %v927
    %1193 = vmatprep.subr.bf16.mxu0 0
    %1194 = vmatpush1.bf16.msra.mxu0 %v930
    %1195 = vmatprep.subr.bf16.mxu0 0
    %1196 = vmatpush1.bf16.msra.mxu0 %v933
    %1197 = vmatprep.subr.bf16.mxu0 0
    %1198 = vmatpush1.bf16.msra.mxu0 %v936
    %1199 = vmatprep.subr.bf16.mxu0 0
    %1200 = vmatpush1.bf16.msra.mxu0 %v939
    %1201 = vmatprep.subr.bf16.mxu0 0
    %1202 = vmatpush1.bf16.msra.mxu0 %v942
    %1203 = vmatprep.subr.bf16.mxu0 0
    %1204 = vmatpush1.bf16.msra.mxu0 %v945
    %1205 = vmatprep.subr.bf16.mxu0 0
    %1206 = vmatpush1.bf16.msra.mxu0 %v948
    %1207 = vmatprep.mubr.bf16.mxu0 %v429
    %1208 = vmatmul.mubr.bf16.gmra.mrb[0].mxu0 %v428
    %v1209 = vpop.f32.mrb[0].mxu0
    %v1210 = vadd.f32 %v577, %v1209
    %v1211 = vpop.f32.mrb[0].mxu0
    %v1212 = vpop.f32.mrb[0].mxu0
    %v1213 = vpop.f32.mrb[0].mxu0
    %1214 = vdwg.mxu0
    %1215 = vmatprep.subr.bf16.mxu0 0
    %1216 = vmatpush1.bf16.msra.mxu0 %v951
    %1217 = vmatprep.subr.bf16.mxu0 0
    %1218 = vmatpush1.bf16.msra.mxu0 %v954
    %1219 = vmatprep.subr.bf16.mxu0 0
    %1220 = vmatpush1.bf16.msra.mxu0 %v957
    %1221 = vmatprep.subr.bf16.mxu0 0
    %1222 = vmatpush1.bf16.msra.mxu0 %v960
    %1223 = vmatprep.subr.bf16.mxu0 0
    %1224 = vmatpush1.bf16.msra.mxu0 %v963
    %1225 = vmatprep.subr.bf16.mxu0 0
    %1226 = vmatpush1.bf16.msra.mxu0 %v966
    %1227 = vmatprep.subr.bf16.mxu0 0
    %1228 = vmatpush1.bf16.msra.mxu0 %v969
    %1229 = vmatprep.subr.bf16.mxu0 0
    %1230 = vmatpush1.bf16.msra.mxu0 %v972
    %1231 = vmatprep.subr.bf16.mxu0 0
    %1232 = vmatpush1.bf16.msra.mxu0 %v975
    %1233 = vmatprep.subr.bf16.mxu0 0
    %1234 = vmatpush1.bf16.msra.mxu0 %v978
    %1235 = vmatprep.subr.bf16.mxu0 0
    %1236 = vmatpush1.bf16.msra.mxu0 %v981
    %1237 = vmatprep.subr.bf16.mxu0 0
    %1238 = vmatpush1.bf16.msra.mxu0 %v984
    %1239 = vmatprep.subr.bf16.mxu0 0
    %1240 = vmatpush1.bf16.msra.mxu0 %v987
    %1241 = vmatprep.subr.bf16.mxu0 0
    %1242 = vmatpush1.bf16.msra.mxu0 %v990
    %1243 = vmatprep.subr.bf16.mxu0 0
    %1244 = vmatpush1.bf16.msra.mxu0 %v993
    %1245 = vmatprep.subr.bf16.mxu0 0
    %1246 = vmatpush1.bf16.msra.mxu0 %v996
    %1247 = vmatprep.mubr.bf16.mxu0 %v431
    %1248 = vmatmul.mubr.bf16.gmra.mrb[0].mxu0 %v430
    %v1249 = vpop.f32.mrb[0].mxu0
    %v1250 = vadd.f32 %v1210, %v1249
    %v1251 = vpop.f32.mrb[0].mxu0
    %v1252 = vpop.f32.mrb[0].mxu0
    %v1253 = vpop.f32.mrb[0].mxu0
    %1254 = vdwg.mxu0
    %v1255 = vmax.f32 %v1169, 0.0
    %v1256 = vmax.f32 %v1171, 0.0
    %v1257 = vmax.f32 %v1250, 0.0
    %v1258 = vpack.c.bf16 %v1255, %v1255
    %v1259 = vpack.c.bf16 %v1256, %v1256
    %v1260 = vpack.c.bf16 %v1257, %v1257
    %v1261 = vld [vmem:[#allocation10] sm:$0xff]
    %v1262 = vld [vmem:[#allocation10 + $0x8] sm:$0xf]
    %v1263 = vld [vmem:[#allocation10 + $0xc] sm:$0xff]
    %v1264 = vld [vmem:[#allocation10 + $0x14] sm:$0xf]
    %v1265 = vld [vmem:[#allocation10 + $0x18] sm:$0xff]
    %v1266 = vld [vmem:[#allocation10 + $0x20] sm:$0xf]
    %v1267 = vld [vmem:[#allocation10 + $0x24] sm:$0xff]
    %v1268 = vld [vmem:[#allocation10 + $0x2c] sm:$0xf]
    %v1269 = vld [vmem:[#allocation10 + $0x30] sm:$0xff]
    %v1270 = vld [vmem:[#allocation10 + $0x38] sm:$0xf]
    %v1271 = vld [vmem:[#allocation10 + $0x3c] sm:$0xff]
    %v1272 = vld [vmem:[#allocation10 + $0x44] sm:$0xf]
    %v1273 = vld [vmem:[#allocation10 + $0x48] sm:$0xff]
    %v1274 = vld [vmem:[#allocation10 + $0x50] sm:$0xf]
    %v1275 = vld [vmem:[#allocation10 + $0x54] sm:$0xff]
    %v1276 = vld [vmem:[#allocation10 + $0x5c] sm:$0xf]
    %v1277 = vld [vmem:[#allocation10 + $0x60] sm:$0xff]
    %v1278 = vld [vmem:[#allocation10 + $0x68] sm:$0xf]
    %v1279 = vld [vmem:[#allocation10 + $0x6c] sm:$0xff]
    %v1280 = vld [vmem:[#allocation10 + $0x74] sm:$0xf]
    %v1281 = vld [vmem:[#allocation10 + $0x78] sm:$0xff]
    %v1282 = vld [vmem:[#allocation10 + $0x80] sm:$0xf]
    %v1283 = vld [vmem:[#allocation10 + $0x84] sm:$0xff]
    %v1284 = vld [vmem:[#allocation10 + $0x8c] sm:$0xf]
    %v1285 = vld [vmem:[#allocation10 + $0x90] sm:$0xff]
    %v1286 = vld [vmem:[#allocation10 + $0x98] sm:$0xf]
    %v1287 = vld [vmem:[#allocation10 + $0x9c] sm:$0xff]
    %v1288 = vld [vmem:[#allocation10 + $0xa4] sm:$0xf]
    %v1289 = vld [vmem:[#allocation10 + $0xa8] sm:$0xff]
    %v1290 = vld [vmem:[#allocation10 + $0xb0] sm:$0xf]
    %v1291 = vld [vmem:[#allocation10 + $0xb4] sm:$0xff]
    %v1292 = vld [vmem:[#allocation10 + $0xbc] sm:$0xf]
    %v1293 = vld [vmem:[#allocation10 + $0xc0] sm:$0xff]
    %v1294 = vld [vmem:[#allocation10 + $0xc8] sm:$0xf]
    %v1295 = vld [vmem:[#allocation10 + $0xcc] sm:$0xff]
    %v1296 = vld [vmem:[#allocation10 + $0xd4] sm:$0xf]
    %v1297 = vld [vmem:[#allocation10 + $0xd8] sm:$0xff]
    %v1298 = vld [vmem:[#allocation10 + $0xe0] sm:$0xf]
    %v1299 = vld [vmem:[#allocation10 + $0xe4] sm:$0xff]
    %v1300 = vld [vmem:[#allocation10 + $0xec] sm:$0xf]
    %v1301 = vld [vmem:[#allocation10 + $0xf0] sm:$0xff]
    %v1302 = vld [vmem:[#allocation10 + $0xf8] sm:$0xf]
    %v1303 = vld [vmem:[#allocation10 + $0xfc] sm:$0xff]
    %v1304 = vld [vmem:[#allocation10 + $0x104] sm:$0xf]
    %v1305 = vld [vmem:[#allocation10 + $0x108] sm:$0xff]
    %v1306 = vld [vmem:[#allocation10 + $0x110] sm:$0xf]
    %v1307 = vld [vmem:[#allocation10 + $0x114] sm:$0xff]
    %v1308 = vld [vmem:[#allocation10 + $0x11c] sm:$0xf]
    %v1309 = vld [vmem:[#allocation10 + $0x120] sm:$0xff]
    %v1310 = vld [vmem:[#allocation10 + $0x128] sm:$0xf]
    %v1311 = vld [vmem:[#allocation10 + $0x12c] sm:$0xff]
    %v1312 = vld [vmem:[#allocation10 + $0x134] sm:$0xf]
    %v1313 = vld [vmem:[#allocation10 + $0x138] sm:$0xff]
    %v1314 = vld [vmem:[#allocation10 + $0x140] sm:$0xf]
    %v1315 = vld [vmem:[#allocation10 + $0x144] sm:$0xff]
    %v1316 = vld [vmem:[#allocation10 + $0x14c] sm:$0xf]
    %v1317 = vld [vmem:[#allocation10 + $0x150] sm:$0xff]
    %v1318 = vld [vmem:[#allocation10 + $0x158] sm:$0xf]
    %v1319 = vld [vmem:[#allocation10 + $0x15c] sm:$0xff]
    %v1320 = vld [vmem:[#allocation10 + $0x164] sm:$0xf]
    %v1321 = vld [vmem:[#allocation10 + $0x168] sm:$0xff]
    %v1322 = vld [vmem:[#allocation10 + $0x170] sm:$0xf]
    %v1323 = vld [vmem:[#allocation10 + $0x174] sm:$0xff]
    %v1324 = vld [vmem:[#allocation10 + $0x17c] sm:$0xf]
    %v1325 = vld [vmem:[#allocation10 + $0x180] sm:$0xff]
    %v1326 = vld [vmem:[#allocation10 + $0x188] sm:$0xf]
    %v1327 = vld [vmem:[#allocation10 + $0x18c] sm:$0xff]
    %v1328 = vld [vmem:[#allocation10 + $0x194] sm:$0xf]
    %v1329 = vld [vmem:[#allocation10 + $0x198] sm:$0xff]
    %v1330 = vld [vmem:[#allocation10 + $0x1a0] sm:$0xf]
    %v1331 = vld [vmem:[#allocation10 + $0x1a4] sm:$0xff]
    %v1332 = vld [vmem:[#allocation10 + $0x1ac] sm:$0xf]
    %v1333 = vld [vmem:[#allocation10 + $0x1b0] sm:$0xff]
    %v1334 = vld [vmem:[#allocation10 + $0x1b8] sm:$0xf]
    %v1335 = vld [vmem:[#allocation10 + $0x1bc] sm:$0xff]
    %v1336 = vld [vmem:[#allocation10 + $0x1c4] sm:$0xf]
    %v1337 = vld [vmem:[#allocation10 + $0x1c8] sm:$0xff]
    %v1338 = vld [vmem:[#allocation10 + $0x1d0] sm:$0xf]
    %v1339 = vld [vmem:[#allocation10 + $0x1d4] sm:$0xff]
    %v1340 = vld [vmem:[#allocation10 + $0x1dc] sm:$0xf]
    %v1341 = vld [vmem:[#allocation10 + $0x1e0] sm:$0xff]
    %v1342 = vld [vmem:[#allocation10 + $0x1e8] sm:$0xf]
    %v1343 = vld [vmem:[#allocation10 + $0x1ec] sm:$0xff]
    %v1344 = vld [vmem:[#allocation10 + $0x1f4] sm:$0xf]
    %v1345 = vld [vmem:[#allocation10 + $0x1f8] sm:$0xff]
    %v1346 = vld [vmem:[#allocation10 + $0x200] sm:$0xf]
    %v1347 = vld [vmem:[#allocation10 + $0x204] sm:$0xff]
    %v1348 = vld [vmem:[#allocation10 + $0x20c] sm:$0xf]
    %v1349 = vld [vmem:[#allocation10 + $0x210] sm:$0xff]
    %v1350 = vld [vmem:[#allocation10 + $0x218] sm:$0xf]
    %v1351 = vld [vmem:[#allocation10 + $0x21c] sm:$0xff]
    %v1352 = vld [vmem:[#allocation10 + $0x224] sm:$0xf]
    %v1353 = vld [vmem:[#allocation10 + $0x228] sm:$0xff]
    %v1354 = vld [vmem:[#allocation10 + $0x230] sm:$0xf]
    %v1355 = vld [vmem:[#allocation10 + $0x234] sm:$0xff]
    %v1356 = vld [vmem:[#allocation10 + $0x23c] sm:$0xf]
    %v1357 = vld [vmem:[#allocation10 + $0x240] sm:$0xff]
    %v1358 = vld [vmem:[#allocation10 + $0x248] sm:$0xf]
    %v1359 = vld [vmem:[#allocation10 + $0x24c] sm:$0xff]
    %v1360 = vld [vmem:[#allocation10 + $0x254] sm:$0xf]
    %v1361 = vld [vmem:[#allocation10 + $0x258] sm:$0xff]
    %v1362 = vld [vmem:[#allocation10 + $0x260] sm:$0xf]
    %v1363 = vld [vmem:[#allocation10 + $0x264] sm:$0xff]
    %v1364 = vld [vmem:[#allocation10 + $0x26c] sm:$0xf]
    %v1365 = vld [vmem:[#allocation10 + $0x270] sm:$0xff]
    %v1366 = vld [vmem:[#allocation10 + $0x278] sm:$0xf]
    %v1367 = vld [vmem:[#allocation10 + $0x27c] sm:$0xff]
    %v1368 = vld [vmem:[#allocation10 + $0x284] sm:$0xf]
    %v1369 = vld [vmem:[#allocation10 + $0x288] sm:$0xff]
    %v1370 = vld [vmem:[#allocation10 + $0x290] sm:$0xf]
    %v1371 = vld [vmem:[#allocation10 + $0x294] sm:$0xff]
    %v1372 = vld [vmem:[#allocation10 + $0x29c] sm:$0xf]
    %v1373 = vld [vmem:[#allocation10 + $0x2a0] sm:$0xff]
    %v1374 = vld [vmem:[#allocation10 + $0x2a8] sm:$0xf]
    %v1375 = vld [vmem:[#allocation10 + $0x2ac] sm:$0xff]
    %v1376 = vld [vmem:[#allocation10 + $0x2b4] sm:$0xf]
    %v1377 = vld [vmem:[#allocation10 + $0x2b8] sm:$0xff]
    %v1378 = vld [vmem:[#allocation10 + $0x2c0] sm:$0xf]
    %v1379 = vld [vmem:[#allocation10 + $0x2c4] sm:$0xff]
    %v1380 = vld [vmem:[#allocation10 + $0x2cc] sm:$0xf]
    %v1381 = vld [vmem:[#allocation10 + $0x2d0] sm:$0xff]
    %v1382 = vld [vmem:[#allocation10 + $0x2d8] sm:$0xf]
    %v1383 = vld [vmem:[#allocation10 + $0x2dc] sm:$0xff]
    %v1384 = vld [vmem:[#allocation10 + $0x2e4] sm:$0xf]
    %v1385 = vld [vmem:[#allocation10 + $0x2e8] sm:$0xff]
    %v1386 = vld [vmem:[#allocation10 + $0x2f0] sm:$0xf]
    %v1387 = vld [vmem:[#allocation10 + $0x2f4] sm:$0xff]
    %v1388 = vld [vmem:[#allocation10 + $0x2fc] sm:$0xf]
    %v1389 = vld [vmem:[%s6] sm:$0x7]
    %v1391 = vlaneseq
    %v1392 = vshrl.u32 %v1391, 7
    %v1393 = vsub.s32 0, %v1392
    %v1394 = vrot.slane %v1389, %v1393
    %v1395 = vlaneseq
    %v1396 = vshrl.u32 %v1395, 7
    %v1397 = vsub.s32 1, %v1396
    %v1398 = vrot.slane %v1389, %v1397
    %v1399 = vlaneseq
    %v1400 = vshrl.u32 %v1399, 7
    %v1401 = vsub.s32 2, %v1400
    %v1402 = vrot.slane %v1389, %v1401
    %v1534 = vunpack.c.l.b16 %v1261
    %v1535 = vunpack.c.h.b16 %v1261
    %v1536 = vunpack.c.l.b16 %v1262
    %v1537 = vunpack.c.l.b16 %v1263
    %v1538 = vunpack.c.h.b16 %v1263
    %v1539 = vunpack.c.l.b16 %v1264
    %v1540 = vunpack.c.l.b16 %v1265
    %v1541 = vunpack.c.h.b16 %v1265
    %v1542 = vunpack.c.l.b16 %v1266
    %v1543 = vunpack.c.l.b16 %v1267
    %v1544 = vunpack.c.h.b16 %v1267
    %v1545 = vunpack.c.l.b16 %v1268
    %v1546 = vunpack.c.l.b16 %v1269
    %v1547 = vunpack.c.h.b16 %v1269
    %v1548 = vunpack.c.l.b16 %v1270
    %v1549 = vunpack.c.l.b16 %v1271
    %v1550 = vunpack.c.h.b16 %v1271
    %v1551 = vunpack.c.l.b16 %v1272
    %v1552 = vunpack.c.l.b16 %v1273
    %v1553 = vunpack.c.h.b16 %v1273
    %v1554 = vunpack.c.l.b16 %v1274
    %v1555 = vunpack.c.l.b16 %v1275
    %v1556 = vunpack.c.h.b16 %v1275
    %v1557 = vunpack.c.l.b16 %v1276
    %v1558 = vunpack.c.l.b16 %v1277
    %v1559 = vunpack.c.h.b16 %v1277
    %v1560 = vunpack.c.l.b16 %v1278
    %v1561 = vunpack.c.l.b16 %v1279
    %v1562 = vunpack.c.h.b16 %v1279
    %v1563 = vunpack.c.l.b16 %v1280
    %v1564 = vunpack.c.l.b16 %v1281
    %v1565 = vunpack.c.h.b16 %v1281
    %v1566 = vunpack.c.l.b16 %v1282
    %v1567 = vunpack.c.l.b16 %v1283
    %v1568 = vunpack.c.h.b16 %v1283
    %v1569 = vunpack.c.l.b16 %v1284
    %v1570 = vunpack.c.l.b16 %v1285
    %v1571 = vunpack.c.h.b16 %v1285
    %v1572 = vunpack.c.l.b16 %v1286
    %v1573 = vunpack.c.l.b16 %v1287
    %v1574 = vunpack.c.h.b16 %v1287
    %v1575 = vunpack.c.l.b16 %v1288
    %v1576 = vunpack.c.l.b16 %v1289
    %v1577 = vunpack.c.h.b16 %v1289
    %v1578 = vunpack.c.l.b16 %v1290
    %v1579 = vunpack.c.l.b16 %v1291
    %v1580 = vunpack.c.h.b16 %v1291
    %v1581 = vunpack.c.l.b16 %v1292
    %v1582 = vunpack.c.l.b16 %v1293
    %v1583 = vunpack.c.h.b16 %v1293
    %v1584 = vunpack.c.l.b16 %v1294
    %v1585 = vunpack.c.l.b16 %v1295
    %v1586 = vunpack.c.h.b16 %v1295
    %v1587 = vunpack.c.l.b16 %v1296
    %v1588 = vunpack.c.l.b16 %v1297
    %v1589 = vunpack.c.h.b16 %v1297
    %v1590 = vunpack.c.l.b16 %v1298
    %v1591 = vunpack.c.l.b16 %v1299
    %v1592 = vunpack.c.h.b16 %v1299
    %v1593 = vunpack.c.l.b16 %v1300
    %v1594 = vunpack.c.l.b16 %v1301
    %v1595 = vunpack.c.h.b16 %v1301
    %v1596 = vunpack.c.l.b16 %v1302
    %v1597 = vunpack.c.l.b16 %v1303
    %v1598 = vunpack.c.h.b16 %v1303
    %v1599 = vunpack.c.l.b16 %v1304
    %v1600 = vunpack.c.l.b16 %v1305
    %v1601 = vunpack.c.h.b16 %v1305
    %v1602 = vunpack.c.l.b16 %v1306
    %v1603 = vunpack.c.l.b16 %v1307
    %v1604 = vunpack.c.h.b16 %v1307
    %v1605 = vunpack.c.l.b16 %v1308
    %v1606 = vunpack.c.l.b16 %v1309
    %v1607 = vunpack.c.h.b16 %v1309
    %v1608 = vunpack.c.l.b16 %v1310
    %v1609 = vunpack.c.l.b16 %v1311
    %v1610 = vunpack.c.h.b16 %v1311
    %v1611 = vunpack.c.l.b16 %v1312
    %v1612 = vunpack.c.l.b16 %v1313
    %v1613 = vunpack.c.h.b16 %v1313
    %v1614 = vunpack.c.l.b16 %v1314
    %v1615 = vunpack.c.l.b16 %v1315
    %v1616 = vunpack.c.h.b16 %v1315
    %v1617 = vunpack.c.l.b16 %v1316
    %v1618 = vunpack.c.l.b16 %v1317
    %v1619 = vunpack.c.h.b16 %v1317
    %v1620 = vunpack.c.l.b16 %v1318
    %v1621 = vunpack.c.l.b16 %v1319
    %v1622 = vunpack.c.h.b16 %v1319
    %v1623 = vunpack.c.l.b16 %v1320
    %v1624 = vunpack.c.l.b16 %v1321
    %v1625 = vunpack.c.h.b16 %v1321
    %v1626 = vunpack.c.l.b16 %v1322
    %v1627 = vunpack.c.l.b16 %v1323
    %v1628 = vunpack.c.h.b16 %v1323
    %v1629 = vunpack.c.l.b16 %v1324
    %v1630 = vunpack.c.l.b16 %v1325
    %v1631 = vunpack.c.h.b16 %v1325
    %v1632 = vunpack.c.l.b16 %v1326
    %v1633 = vunpack.c.l.b16 %v1327
    %v1634 = vunpack.c.h.b16 %v1327
    %v1635 = vunpack.c.l.b16 %v1328
    %v1636 = vunpack.c.l.b16 %v1329
    %v1637 = vunpack.c.h.b16 %v1329
    %v1638 = vunpack.c.l.b16 %v1330
    %v1639 = vunpack.c.l.b16 %v1331
    %v1640 = vunpack.c.h.b16 %v1331
    %v1641 = vunpack.c.l.b16 %v1332
    %v1642 = vunpack.c.l.b16 %v1333
    %v1643 = vunpack.c.h.b16 %v1333
    %v1644 = vunpack.c.l.b16 %v1334
    %v1645 = vunpack.c.l.b16 %v1335
    %v1646 = vunpack.c.h.b16 %v1335
    %v1647 = vunpack.c.l.b16 %v1336
    %v1648 = vunpack.c.l.b16 %v1337
    %v1649 = vunpack.c.h.b16 %v1337
    %v1650 = vunpack.c.l.b16 %v1338
    %v1651 = vunpack.c.l.b16 %v1339
    %v1652 = vunpack.c.h.b16 %v1339
    %v1653 = vunpack.c.l.b16 %v1340
    %v1654 = vunpack.c.l.b16 %v1341
    %v1655 = vunpack.c.h.b16 %v1341
    %v1656 = vunpack.c.l.b16 %v1342
    %v1657 = vunpack.c.l.b16 %v1343
    %v1658 = vunpack.c.h.b16 %v1343
    %v1659 = vunpack.c.l.b16 %v1344
    %v1660 = vunpack.c.l.b16 %v1345
    %v1661 = vunpack.c.h.b16 %v1345
    %v1662 = vunpack.c.l.b16 %v1346
    %v1663 = vunpack.c.l.b16 %v1347
    %v1664 = vunpack.c.h.b16 %v1347
    %v1665 = vunpack.c.l.b16 %v1348
    %v1666 = vunpack.c.l.b16 %v1349
    %v1667 = vunpack.c.h.b16 %v1349
    %v1668 = vunpack.c.l.b16 %v1350
    %v1669 = vunpack.c.l.b16 %v1351
    %v1670 = vunpack.c.h.b16 %v1351
    %v1671 = vunpack.c.l.b16 %v1352
    %v1672 = vunpack.c.l.b16 %v1353
    %v1673 = vunpack.c.h.b16 %v1353
    %v1674 = vunpack.c.l.b16 %v1354
    %v1675 = vunpack.c.l.b16 %v1355
    %v1676 = vunpack.c.h.b16 %v1355
    %v1677 = vunpack.c.l.b16 %v1356
    %v1678 = vunpack.c.l.b16 %v1357
    %v1679 = vunpack.c.h.b16 %v1357
    %v1680 = vunpack.c.l.b16 %v1358
    %v1681 = vunpack.c.l.b16 %v1359
    %v1682 = vunpack.c.h.b16 %v1359
    %v1683 = vunpack.c.l.b16 %v1360
    %v1684 = vunpack.c.l.b16 %v1361
    %v1685 = vunpack.c.h.b16 %v1361
    %v1686 = vunpack.c.l.b16 %v1362
    %v1687 = vunpack.c.l.b16 %v1363
    %v1688 = vunpack.c.h.b16 %v1363
    %v1689 = vunpack.c.l.b16 %v1364
    %v1690 = vunpack.c.l.b16 %v1365
    %v1691 = vunpack.c.h.b16 %v1365
    %v1692 = vunpack.c.l.b16 %v1366
    %v1693 = vunpack.c.l.b16 %v1367
    %v1694 = vunpack.c.h.b16 %v1367
    %v1695 = vunpack.c.l.b16 %v1368
    %v1696 = vunpack.c.l.b16 %v1369
    %v1697 = vunpack.c.h.b16 %v1369
    %v1698 = vunpack.c.l.b16 %v1370
    %v1699 = vunpack.c.l.b16 %v1371
    %v1700 = vunpack.c.h.b16 %v1371
    %v1701 = vunpack.c.l.b16 %v1372
    %v1702 = vunpack.c.l.b16 %v1373
    %v1703 = vunpack.c.h.b16 %v1373
    %v1704 = vunpack.c.l.b16 %v1374
    %v1705 = vunpack.c.l.b16 %v1375
    %v1706 = vunpack.c.h.b16 %v1375
    %v1707 = vunpack.c.l.b16 %v1376
    %v1708 = vunpack.c.l.b16 %v1377
    %v1709 = vunpack.c.h.b16 %v1377
    %v1710 = vunpack.c.l.b16 %v1378
    %v1711 = vunpack.c.l.b16 %v1379
    %v1712 = vunpack.c.h.b16 %v1379
    %v1713 = vunpack.c.l.b16 %v1380
    %v1714 = vunpack.c.l.b16 %v1381
    %v1715 = vunpack.c.h.b16 %v1381
    %v1716 = vunpack.c.l.b16 %v1382
    %v1717 = vunpack.c.l.b16 %v1383
    %v1718 = vunpack.c.h.b16 %v1383
    %v1719 = vunpack.c.l.b16 %v1384
    %v1720 = vunpack.c.l.b16 %v1385
    %v1721 = vunpack.c.h.b16 %v1385
    %v1722 = vunpack.c.l.b16 %v1386
    %v1723 = vunpack.c.l.b16 %v1387
    %v1724 = vunpack.c.h.b16 %v1387
    %v1725 = vunpack.c.l.b16 %v1388
    %v1726 = vpack.c.b16 %v1537, %v1534
    %v1727 = vpack.c.b16 %v1538, %v1535
    %v1728 = vpack.c.b16 %v1539, %v1536
    %v1729 = vpack.c.b16 %v1543, %v1540
    %v1730 = vpack.c.b16 %v1544, %v1541
    %v1731 = vpack.c.b16 %v1545, %v1542
    %v1732 = vpack.c.b16 %v1549, %v1546
    %v1733 = vpack.c.b16 %v1550, %v1547
    %v1734 = vpack.c.b16 %v1551, %v1548
    %v1735 = vpack.c.b16 %v1555, %v1552
    %v1736 = vpack.c.b16 %v1556, %v1553
    %v1737 = vpack.c.b16 %v1557, %v1554
    %v1738 = vpack.c.b16 %v1561, %v1558
    %v1739 = vpack.c.b16 %v1562, %v1559
    %v1740 = vpack.c.b16 %v1563, %v1560
    %v1741 = vpack.c.b16 %v1567, %v1564
    %v1742 = vpack.c.b16 %v1568, %v1565
    %v1743 = vpack.c.b16 %v1569, %v1566
    %v1744 = vpack.c.b16 %v1573, %v1570
    %v1745 = vpack.c.b16 %v1574, %v1571
    %v1746 = vpack.c.b16 %v1575, %v1572
    %v1747 = vpack.c.b16 %v1579, %v1576
    %v1748 = vpack.c.b16 %v1580, %v1577
    %v1749 = vpack.c.b16 %v1581, %v1578
    %v1750 = vpack.c.b16 %v1585, %v1582
    %v1751 = vpack.c.b16 %v1586, %v1583
    %v1752 = vpack.c.b16 %v1587, %v1584
    %v1753 = vpack.c.b16 %v1591, %v1588
    %v1754 = vpack.c.b16 %v1592, %v1589
    %v1755 = vpack.c.b16 %v1593, %v1590
    %v1756 = vpack.c.b16 %v1597, %v1594
    %v1757 = vpack.c.b16 %v1598, %v1595
    %v1758 = vpack.c.b16 %v1599, %v1596
    %v1759 = vpack.c.b16 %v1603, %v1600
    %v1760 = vpack.c.b16 %v1604, %v1601
    %v1761 = vpack.c.b16 %v1605, %v1602
    %v1762 = vpack.c.b16 %v1609, %v1606
    %v1763 = vpack.c.b16 %v1610, %v1607
    %v1764 = vpack.c.b16 %v1611, %v1608
    %v1765 = vpack.c.b16 %v1615, %v1612
    %v1766 = vpack.c.b16 %v1616, %v1613
    %v1767 = vpack.c.b16 %v1617, %v1614
    %v1768 = vpack.c.b16 %v1621, %v1618
    %v1769 = vpack.c.b16 %v1622, %v1619
    %v1770 = vpack.c.b16 %v1623, %v1620
    %v1771 = vpack.c.b16 %v1627, %v1624
    %v1772 = vpack.c.b16 %v1628, %v1625
    %v1773 = vpack.c.b16 %v1629, %v1626
    %v1774 = vpack.c.b16 %v1633, %v1630
    %v1775 = vpack.c.b16 %v1634, %v1631
    %v1776 = vpack.c.b16 %v1635, %v1632
    %v1777 = vpack.c.b16 %v1639, %v1636
    %v1778 = vpack.c.b16 %v1640, %v1637
    %v1779 = vpack.c.b16 %v1641, %v1638
    %v1780 = vpack.c.b16 %v1645, %v1642
    %v1781 = vpack.c.b16 %v1646, %v1643
    %v1782 = vpack.c.b16 %v1647, %v1644
    %v1783 = vpack.c.b16 %v1651, %v1648
    %v1784 = vpack.c.b16 %v1652, %v1649
    %v1785 = vpack.c.b16 %v1653, %v1650
    %v1786 = vpack.c.b16 %v1657, %v1654
    %v1787 = vpack.c.b16 %v1658, %v1655
    %v1788 = vpack.c.b16 %v1659, %v1656
    %v1789 = vpack.c.b16 %v1663, %v1660
    %v1790 = vpack.c.b16 %v1664, %v1661
    %v1791 = vpack.c.b16 %v1665, %v1662
    %v1792 = vpack.c.b16 %v1669, %v1666
    %v1793 = vpack.c.b16 %v1670, %v1667
    %v1794 = vpack.c.b16 %v1671, %v1668
    %v1795 = vpack.c.b16 %v1675, %v1672
    %v1796 = vpack.c.b16 %v1676, %v1673
    %v1797 = vpack.c.b16 %v1677, %v1674
    %v1798 = vpack.c.b16 %v1681, %v1678
    %v1799 = vpack.c.b16 %v1682, %v1679
    %v1800 = vpack.c.b16 %v1683, %v1680
    %v1801 = vpack.c.b16 %v1687, %v1684
    %v1802 = vpack.c.b16 %v1688, %v1685
    %v1803 = vpack.c.b16 %v1689, %v1686
    %v1804 = vpack.c.b16 %v1693, %v1690
    %v1805 = vpack.c.b16 %v1694, %v1691
    %v1806 = vpack.c.b16 %v1695, %v1692
    %v1807 = vpack.c.b16 %v1699, %v1696
    %v1808 = vpack.c.b16 %v1700, %v1697
    %v1809 = vpack.c.b16 %v1701, %v1698
    %v1810 = vpack.c.b16 %v1705, %v1702
    %v1811 = vpack.c.b16 %v1706, %v1703
    %v1812 = vpack.c.b16 %v1707, %v1704
    %v1813 = vpack.c.b16 %v1711, %v1708
    %v1814 = vpack.c.b16 %v1712, %v1709
    %v1815 = vpack.c.b16 %v1713, %v1710
    %v1816 = vpack.c.b16 %v1717, %v1714
    %v1817 = vpack.c.b16 %v1718, %v1715
    %v1818 = vpack.c.b16 %v1719, %v1716
    %v1819 = vpack.c.b16 %v1723, %v1720
    %v1820 = vpack.c.b16 %v1724, %v1721
    %v1821 = vpack.c.b16 %v1725, %v1722
    %1918 = vmatprep.subr.bf16.mxu0 %v1727
    %1919 = vmatpush1.bf16.msra.mxu0 %v1726
    %1920 = vmatprep.subr.bf16.mxu0 %v1730
    %1921 = vmatpush1.bf16.msra.mxu0 %v1729
    %1922 = vmatprep.subr.bf16.mxu0 %v1733
    %1923 = vmatpush1.bf16.msra.mxu0 %v1732
    %1924 = vmatprep.subr.bf16.mxu0 %v1736
    %1925 = vmatpush1.bf16.msra.mxu0 %v1735
    %1926 = vmatprep.subr.bf16.mxu0 %v1739
    %1927 = vmatpush1.bf16.msra.mxu0 %v1738
    %1928 = vmatprep.subr.bf16.mxu0 %v1742
    %1929 = vmatpush1.bf16.msra.mxu0 %v1741
    %1930 = vmatprep.subr.bf16.mxu0 %v1745
    %1931 = vmatpush1.bf16.msra.mxu0 %v1744
    %1932 = vmatprep.subr.bf16.mxu0 %v1748
    %1933 = vmatpush1.bf16.msra.mxu0 %v1747
    %1934 = vmatprep.subr.bf16.mxu0 %v1751
    %1935 = vmatpush1.bf16.msra.mxu0 %v1750
    %1936 = vmatprep.subr.bf16.mxu0 %v1754
    %1937 = vmatpush1.bf16.msra.mxu0 %v1753
    %1938 = vmatprep.subr.bf16.mxu0 %v1757
    %1939 = vmatpush1.bf16.msra.mxu0 %v1756
    %1940 = vmatprep.subr.bf16.mxu0 %v1760
    %1941 = vmatpush1.bf16.msra.mxu0 %v1759
    %1942 = vmatprep.subr.bf16.mxu0 %v1763
    %1943 = vmatpush1.bf16.msra.mxu0 %v1762
    %1944 = vmatprep.subr.bf16.mxu0 %v1766
    %1945 = vmatpush1.bf16.msra.mxu0 %v1765
    %1946 = vmatprep.subr.bf16.mxu0 %v1769
    %1947 = vmatpush1.bf16.msra.mxu0 %v1768
    %1948 = vmatprep.subr.bf16.mxu0 %v1772
    %1949 = vmatpush1.bf16.msra.mxu0 %v1771
    %1950 = vmatprep.mubr.bf16.mxu0 %v433
    %1951 = vmatmul.mubr.bf16.gmra.mrb[0].mxu0 %v432
    %v1952 = vpop.f32.mrb[0].mxu0
    %v1953 = vadd.f32 %v1394, %v1952
    %v1954 = vpop.f32.mrb[0].mxu0
    %v1955 = vadd.f32 %v1398, %v1954
    %v1956 = vpop.f32.mrb[0].mxu0
    %v1957 = vpop.f32.mrb[0].mxu0
    %1958 = vdwg.mxu0
    %1959 = vmatprep.subr.bf16.mxu0 %v1775
    %1960 = vmatpush1.bf16.msra.mxu0 %v1774
    %1961 = vmatprep.subr.bf16.mxu0 %v1778
    %1962 = vmatpush1.bf16.msra.mxu0 %v1777
    %1963 = vmatprep.subr.bf16.mxu0 %v1781
    %1964 = vmatpush1.bf16.msra.mxu0 %v1780
    %1965 = vmatprep.subr.bf16.mxu0 %v1784
    %1966 = vmatpush1.bf16.msra.mxu0 %v1783
    %1967 = vmatprep.subr.bf16.mxu0 %v1787
    %1968 = vmatpush1.bf16.msra.mxu0 %v1786
    %1969 = vmatprep.subr.bf16.mxu0 %v1790
    %1970 = vmatpush1.bf16.msra.mxu0 %v1789
    %1971 = vmatprep.subr.bf16.mxu0 %v1793
    %1972 = vmatpush1.bf16.msra.mxu0 %v1792
    %1973 = vmatprep.subr.bf16.mxu0 %v1796
    %1974 = vmatpush1.bf16.msra.mxu0 %v1795
    %1975 = vmatprep.subr.bf16.mxu0 %v1799
    %1976 = vmatpush1.bf16.msra.mxu0 %v1798
    %1977 = vmatprep.subr.bf16.mxu0 %v1802
    %1978 = vmatpush1.bf16.msra.mxu0 %v1801
    %1979 = vmatprep.subr.bf16.mxu0 %v1805
    %1980 = vmatpush1.bf16.msra.mxu0 %v1804
    %1981 = vmatprep.subr.bf16.mxu0 %v1808
    %1982 = vmatpush1.bf16.msra.mxu0 %v1807
    %1983 = vmatprep.subr.bf16.mxu0 %v1811
    %1984 = vmatpush1.bf16.msra.mxu0 %v1810
    %1985 = vmatprep.subr.bf16.mxu0 %v1814
    %1986 = vmatpush1.bf16.msra.mxu0 %v1813
    %1987 = vmatprep.subr.bf16.mxu0 %v1817
    %1988 = vmatpush1.bf16.msra.mxu0 %v1816
    %1989 = vmatprep.subr.bf16.mxu0 %v1820
    %1990 = vmatpush1.bf16.msra.mxu0 %v1819
    %1991 = vmatprep.mubr.bf16.mxu0 %v435
    %1992 = vmatmul.mubr.bf16.gmra.mrb[0].mxu0 %v434
    %v1993 = vpop.f32.mrb[0].mxu0
    %v1994 = vadd.f32 %v1953, %v1993
    %v1995 = vpop.f32.mrb[0].mxu0
    %v1996 = vadd.f32 %v1955, %v1995
    %v1997 = vpop.f32.mrb[0].mxu0
    %v1998 = vpop.f32.mrb[0].mxu0
    %1999 = vdwg.mxu0
    %2000 = vmatprep.subr.bf16.mxu0 0
    %2001 = vmatpush1.bf16.msra.mxu0 %v1728
    %2002 = vmatprep.subr.bf16.mxu0 0
    %2003 = vmatpush1.bf16.msra.mxu0 %v1731
    %2004 = vmatprep.subr.bf16.mxu0 0
    %2005 = vmatpush1.bf16.msra.mxu0 %v1734
    %2006 = vmatprep.subr.bf16.mxu0 0
    %2007 = vmatpush1.bf16.msra.mxu0 %v1737
    %2008 = vmatprep.subr.bf16.mxu0 0
    %2009 = vmatpush1.bf16.msra.mxu0 %v1740
    %2010 = vmatprep.subr.bf16.mxu0 0
    %2011 = vmatpush1.bf16.msra.mxu0 %v1743
    %2012 = vmatprep.subr.bf16.mxu0 0
    %2013 = vmatpush1.bf16.msra.mxu0 %v1746
    %2014 = vmatprep.subr.bf16.mxu0 0
    %2015 = vmatpush1.bf16.msra.mxu0 %v1749
    %2016 = vmatprep.subr.bf16.mxu0 0
    %2017 = vmatpush1.bf16.msra.mxu0 %v1752
    %2018 = vmatprep.subr.bf16.mxu0 0
    %2019 = vmatpush1.bf16.msra.mxu0 %v1755
    %2020 = vmatprep.subr.bf16.mxu0 0
    %2021 = vmatpush1.bf16.msra.mxu0 %v1758
    %2022 = vmatprep.subr.bf16.mxu0 0
    %2023 = vmatpush1.bf16.msra.mxu0 %v1761
    %2024 = vmatprep.subr.bf16.mxu0 0
    %2025 = vmatpush1.bf16.msra.mxu0 %v1764
    %2026 = vmatprep.subr.bf16.mxu0 0
    %2027 = vmatpush1.bf16.msra.mxu0 %v1767
    %2028 = vmatprep.subr.bf16.mxu0 0
    %2029 = vmatpush1.bf16.msra.mxu0 %v1770
    %2030 = vmatprep.subr.bf16.mxu0 0
    %2031 = vmatpush1.bf16.msra.mxu0 %v1773
    %2032 = vmatprep.mubr.bf16.mxu0 %v433
    %2033 = vmatmul.mubr.bf16.gmra.mrb[0].mxu0 %v432
    %v2034 = vpop.f32.mrb[0].mxu0
    %v2035 = vadd.f32 %v1402, %v2034
    %v2036 = vpop.f32.mrb[0].mxu0
    %v2037 = vpop.f32.mrb[0].mxu0
    %v2038 = vpop.f32.mrb[0].mxu0
    %2039 = vdwg.mxu0
    %2040 = vmatprep.subr.bf16.mxu0 0
    %2041 = vmatpush1.bf16.msra.mxu0 %v1776
    %2042 = vmatprep.subr.bf16.mxu0 0
    %2043 = vmatpush1.bf16.msra.mxu0 %v1779
    %2044 = vmatprep.subr.bf16.mxu0 0
    %2045 = vmatpush1.bf16.msra.mxu0 %v1782
    %2046 = vmatprep.subr.bf16.mxu0 0
    %2047 = vmatpush1.bf16.msra.mxu0 %v1785
    %2048 = vmatprep.subr.bf16.mxu0 0
    %2049 = vmatpush1.bf16.msra.mxu0 %v1788
    %2050 = vmatprep.subr.bf16.mxu0 0
    %2051 = vmatpush1.bf16.msra.mxu0 %v1791
    %2052 = vmatprep.subr.bf16.mxu0 0
    %2053 = vmatpush1.bf16.msra.mxu0 %v1794
    %2054 = vmatprep.subr.bf16.mxu0 0
    %2055 = vmatpush1.bf16.msra.mxu0 %v1797
    %2056 = vmatprep.subr.bf16.mxu0 0
    %2057 = vmatpush1.bf16.msra.mxu0 %v1800
    %2058 = vmatprep.subr.bf16.mxu0 0
    %2059 = vmatpush1.bf16.msra.mxu0 %v1803
    %2060 = vmatprep.subr.bf16.mxu0 0
    %2061 = vmatpush1.bf16.msra.mxu0 %v1806
    %2062 = vmatprep.subr.bf16.mxu0 0
    %2063 = vmatpush1.bf16.msra.mxu0 %v1809
    %2064 = vmatprep.subr.bf16.mxu0 0
    %2065 = vmatpush1.bf16.msra.mxu0 %v1812
    %2066 = vmatprep.subr.bf16.mxu0 0
    %2067 = vmatpush1.bf16.msra.mxu0 %v1815
    %2068 = vmatprep.subr.bf16.mxu0 0
    %2069 = vmatpush1.bf16.msra.mxu0 %v1818
    %2070 = vmatprep.subr.bf16.mxu0 0
    %2071 = vmatpush1.bf16.msra.mxu0 %v1821
    %2072 = vmatprep.mubr.bf16.mxu0 %v435
    %2073 = vmatmul.mubr.bf16.gmra.mrb[0].mxu0 %v434
    %v2074 = vpop.f32.mrb[0].mxu0
    %v2075 = vadd.f32 %v2035, %v2074
    %v2076 = vpop.f32.mrb[0].mxu0
    %v2077 = vpop.f32.mrb[0].mxu0
    %v2078 = vpop.f32.mrb[0].mxu0
    %2079 = vdwg.mxu0
    %v2080 = vmax.f32 %v1994, 0.0
    %v2081 = vmax.f32 %v1996, 0.0
    %v2082 = vmax.f32 %v2075, 0.0
    %v2083 = vpack.c.bf16 %v2080, %v2080
    %v2084 = vpack.c.bf16 %v2081, %v2081
    %v2085 = vpack.c.bf16 %v2082, %v2082
    %v2086 = vld [vmem:[#allocation11] sm:$0xf]
    %v2087 = vld [vmem:[#allocation11 + $0x4] sm:$0xf]
    %v2088 = vld [vmem:[#allocation11 + $0x8] sm:$0xf]
    %v2089 = vld [vmem:[#allocation11 + $0xc] sm:$0xf]
    %v2090 = vld [vmem:[#allocation11 + $0x10] sm:$0xf]
    %v2091 = vld [vmem:[#allocation11 + $0x14] sm:$0xf]
    %v2092 = vld [vmem:[#allocation11 + $0x18] sm:$0xf]
    %v2093 = vld [vmem:[#allocation11 + $0x1c] sm:$0xf]
    %v2094 = vld [vmem:[#allocation11 + $0x20] sm:$0xf]
    %v2095 = vld [vmem:[#allocation11 + $0x24] sm:$0xf]
    %v2096 = vld [vmem:[#allocation11 + $0x28] sm:$0xf]
    %v2097 = vld [vmem:[#allocation11 + $0x2c] sm:$0xf]
    %v2098 = vld [vmem:[#allocation11 + $0x30] sm:$0xf]
    %v2099 = vld [vmem:[#allocation11 + $0x34] sm:$0xf]
    %v2100 = vld [vmem:[#allocation11 + $0x38] sm:$0xf]
    %v2101 = vld [vmem:[#allocation11 + $0x3c] sm:$0xf]
    %v2102 = vld [vmem:[#allocation11 + $0x40] sm:$0xf]
    %v2103 = vld [vmem:[#allocation11 + $0x44] sm:$0xf]
    %v2104 = vld [vmem:[#allocation11 + $0x48] sm:$0xf]
    %v2105 = vld [vmem:[#allocation11 + $0x4c] sm:$0xf]
    %v2106 = vld [vmem:[#allocation11 + $0x50] sm:$0xf]
    %v2107 = vld [vmem:[#allocation11 + $0x54] sm:$0xf]
    %v2108 = vld [vmem:[#allocation11 + $0x58] sm:$0xf]
    %v2109 = vld [vmem:[#allocation11 + $0x5c] sm:$0xf]
    %v2110 = vld [vmem:[#allocation11 + $0x60] sm:$0xf]
    %v2111 = vld [vmem:[#allocation11 + $0x64] sm:$0xf]
    %v2112 = vld [vmem:[#allocation11 + $0x68] sm:$0xf]
    %v2113 = vld [vmem:[#allocation11 + $0x6c] sm:$0xf]
    %v2114 = vld [vmem:[#allocation11 + $0x70] sm:$0xf]
    %v2115 = vld [vmem:[#allocation11 + $0x74] sm:$0xf]
    %v2116 = vld [vmem:[#allocation11 + $0x78] sm:$0xf]
    %v2117 = vld [vmem:[#allocation11 + $0x7c] sm:$0xf]
    %v2118 = vld [vmem:[#allocation11 + $0x80] sm:$0xf]
    %v2119 = vld [vmem:[#allocation11 + $0x84] sm:$0xf]
    %v2120 = vld [vmem:[#allocation11 + $0x88] sm:$0xf]
    %v2121 = vld [vmem:[#allocation11 + $0x8c] sm:$0xf]
    %v2122 = vld [vmem:[#allocation11 + $0x90] sm:$0xf]
    %v2123 = vld [vmem:[#allocation11 + $0x94] sm:$0xf]
    %v2124 = vld [vmem:[#allocation11 + $0x98] sm:$0xf]
    %v2125 = vld [vmem:[#allocation11 + $0x9c] sm:$0xf]
    %v2126 = vld [vmem:[#allocation11 + $0xa0] sm:$0xf]
    %v2127 = vld [vmem:[#allocation11 + $0xa4] sm:$0xf]
    %v2128 = vld [vmem:[#allocation11 + $0xa8] sm:$0xf]
    %v2129 = vld [vmem:[#allocation11 + $0xac] sm:$0xf]
    %v2130 = vld [vmem:[#allocation11 + $0xb0] sm:$0xf]
    %v2131 = vld [vmem:[#allocation11 + $0xb4] sm:$0xf]
    %v2132 = vld [vmem:[#allocation11 + $0xb8] sm:$0xf]
    %v2133 = vld [vmem:[#allocation11 + $0xbc] sm:$0xf]
    %v2134 = vld [vmem:[#allocation11 + $0xc0] sm:$0xf]
    %v2135 = vld [vmem:[#allocation11 + $0xc4] sm:$0xf]
    %v2136 = vld [vmem:[#allocation11 + $0xc8] sm:$0xf]
    %v2137 = vld [vmem:[#allocation11 + $0xcc] sm:$0xf]
    %v2138 = vld [vmem:[#allocation11 + $0xd0] sm:$0xf]
    %v2139 = vld [vmem:[#allocation11 + $0xd4] sm:$0xf]
    %v2140 = vld [vmem:[#allocation11 + $0xd8] sm:$0xf]
    %v2141 = vld [vmem:[#allocation11 + $0xdc] sm:$0xf]
    %v2142 = vld [vmem:[#allocation11 + $0xe0] sm:$0xf]
    %v2143 = vld [vmem:[#allocation11 + $0xe4] sm:$0xf]
    %v2144 = vld [vmem:[#allocation11 + $0xe8] sm:$0xf]
    %v2145 = vld [vmem:[#allocation11 + $0xec] sm:$0xf]
    %v2146 = vld [vmem:[#allocation11 + $0xf0] sm:$0xf]
    %v2147 = vld [vmem:[#allocation11 + $0xf4] sm:$0xf]
    %v2148 = vld [vmem:[#allocation11 + $0xf8] sm:$0xf]
    %v2149 = vld [vmem:[#allocation11 + $0xfc] sm:$0xf]
    %v2150 = vld [vmem:[#allocation11 + $0x100] sm:$0xf]
    %v2151 = vld [vmem:[#allocation11 + $0x104] sm:$0xf]
    %v2152 = vld [vmem:[#allocation11 + $0x108] sm:$0xf]
    %v2153 = vld [vmem:[#allocation11 + $0x10c] sm:$0xf]
    %v2154 = vld [vmem:[#allocation11 + $0x110] sm:$0xf]
    %v2155 = vld [vmem:[#allocation11 + $0x114] sm:$0xf]
    %v2156 = vld [vmem:[#allocation11 + $0x118] sm:$0xf]
    %v2157 = vld [vmem:[#allocation11 + $0x11c] sm:$0xf]
    %v2158 = vld [vmem:[#allocation11 + $0x120] sm:$0xf]
    %v2159 = vld [vmem:[#allocation11 + $0x124] sm:$0xf]
    %v2160 = vld [vmem:[#allocation11 + $0x128] sm:$0xf]
    %v2161 = vld [vmem:[#allocation11 + $0x12c] sm:$0xf]
    %v2162 = vld [vmem:[#allocation11 + $0x130] sm:$0xf]
    %v2163 = vld [vmem:[#allocation11 + $0x134] sm:$0xf]
    %v2164 = vld [vmem:[#allocation11 + $0x138] sm:$0xf]
    %v2165 = vld [vmem:[#allocation11 + $0x13c] sm:$0xf]
    %v2166 = vld [vmem:[#allocation11 + $0x140] sm:$0xf]
    %v2167 = vld [vmem:[#allocation11 + $0x144] sm:$0xf]
    %v2168 = vld [vmem:[#allocation11 + $0x148] sm:$0xf]
    %v2169 = vld [vmem:[#allocation11 + $0x14c] sm:$0xf]
    %v2170 = vld [vmem:[#allocation11 + $0x150] sm:$0xf]
    %v2171 = vld [vmem:[#allocation11 + $0x154] sm:$0xf]
    %v2172 = vld [vmem:[#allocation11 + $0x158] sm:$0xf]
    %v2173 = vld [vmem:[#allocation11 + $0x15c] sm:$0xf]
    %v2174 = vld [vmem:[#allocation11 + $0x160] sm:$0xf]
    %v2175 = vld [vmem:[#allocation11 + $0x164] sm:$0xf]
    %v2176 = vld [vmem:[#allocation11 + $0x168] sm:$0xf]
    %v2177 = vld [vmem:[#allocation11 + $0x16c] sm:$0xf]
    %v2178 = vld [vmem:[#allocation11 + $0x170] sm:$0xf]
    %v2179 = vld [vmem:[#allocation11 + $0x174] sm:$0xf]
    %v2180 = vld [vmem:[#allocation11 + $0x178] sm:$0xf]
    %v2181 = vld [vmem:[#allocation11 + $0x17c] sm:$0xf]
    %v2182 = vld [vmem:[%s8] sm:$0x1]
    %v2184 = vlaneseq
    %v2185 = vshrl.u32 %v2184, 7
    %v2186 = vsub.s32 0, %v2185
    %v2187 = vrot.slane %v2182, %v2186
    %v2285 = vunpack.c.l.b16 %v2086
    %v2286 = vunpack.c.l.b16 %v2087
    %v2287 = vunpack.c.l.b16 %v2088
    %v2288 = vunpack.c.l.b16 %v2089
    %v2289 = vunpack.c.l.b16 %v2090
    %v2290 = vunpack.c.l.b16 %v2091
    %v2291 = vunpack.c.l.b16 %v2092
    %v2292 = vunpack.c.l.b16 %v2093
    %v2293 = vunpack.c.l.b16 %v2094
    %v2294 = vunpack.c.l.b16 %v2095
    %v2295 = vunpack.c.l.b16 %v2096
    %v2296 = vunpack.c.l.b16 %v2097
    %v2297 = vunpack.c.l.b16 %v2098
    %v2298 = vunpack.c.l.b16 %v2099
    %v2299 = vunpack.c.l.b16 %v2100
    %v2300 = vunpack.c.l.b16 %v2101
    %v2301 = vunpack.c.l.b16 %v2102
    %v2302 = vunpack.c.l.b16 %v2103
    %v2303 = vunpack.c.l.b16 %v2104
    %v2304 = vunpack.c.l.b16 %v2105
    %v2305 = vunpack.c.l.b16 %v2106
    %v2306 = vunpack.c.l.b16 %v2107
    %v2307 = vunpack.c.l.b16 %v2108
    %v2308 = vunpack.c.l.b16 %v2109
    %v2309 = vunpack.c.l.b16 %v2110
    %v2310 = vunpack.c.l.b16 %v2111
    %v2311 = vunpack.c.l.b16 %v2112
    %v2312 = vunpack.c.l.b16 %v2113
    %v2313 = vunpack.c.l.b16 %v2114
    %v2314 = vunpack.c.l.b16 %v2115
    %v2315 = vunpack.c.l.b16 %v2116
    %v2316 = vunpack.c.l.b16 %v2117
    %v2317 = vunpack.c.l.b16 %v2118
    %v2318 = vunpack.c.l.b16 %v2119
    %v2319 = vunpack.c.l.b16 %v2120
    %v2320 = vunpack.c.l.b16 %v2121
    %v2321 = vunpack.c.l.b16 %v2122
    %v2322 = vunpack.c.l.b16 %v2123
    %v2323 = vunpack.c.l.b16 %v2124
    %v2324 = vunpack.c.l.b16 %v2125
    %v2325 = vunpack.c.l.b16 %v2126
    %v2326 = vunpack.c.l.b16 %v2127
    %v2327 = vunpack.c.l.b16 %v2128
    %v2328 = vunpack.c.l.b16 %v2129
    %v2329 = vunpack.c.l.b16 %v2130
    %v2330 = vunpack.c.l.b16 %v2131
    %v2331 = vunpack.c.l.b16 %v2132
    %v2332 = vunpack.c.l.b16 %v2133
    %v2333 = vunpack.c.l.b16 %v2134
    %v2334 = vunpack.c.l.b16 %v2135
    %v2335 = vunpack.c.l.b16 %v2136
    %v2336 = vunpack.c.l.b16 %v2137
    %v2337 = vunpack.c.l.b16 %v2138
    %v2338 = vunpack.c.l.b16 %v2139
    %v2339 = vunpack.c.l.b16 %v2140
    %v2340 = vunpack.c.l.b16 %v2141
    %v2341 = vunpack.c.l.b16 %v2142
    %v2342 = vunpack.c.l.b16 %v2143
    %v2343 = vunpack.c.l.b16 %v2144
    %v2344 = vunpack.c.l.b16 %v2145
    %v2345 = vunpack.c.l.b16 %v2146
    %v2346 = vunpack.c.l.b16 %v2147
    %v2347 = vunpack.c.l.b16 %v2148
    %v2348 = vunpack.c.l.b16 %v2149
    %v2349 = vunpack.c.l.b16 %v2150
    %v2350 = vunpack.c.l.b16 %v2151
    %v2351 = vunpack.c.l.b16 %v2152
    %v2352 = vunpack.c.l.b16 %v2153
    %v2353 = vunpack.c.l.b16 %v2154
    %v2354 = vunpack.c.l.b16 %v2155
    %v2355 = vunpack.c.l.b16 %v2156
    %v2356 = vunpack.c.l.b16 %v2157
    %v2357 = vunpack.c.l.b16 %v2158
    %v2358 = vunpack.c.l.b16 %v2159
    %v2359 = vunpack.c.l.b16 %v2160
    %v2360 = vunpack.c.l.b16 %v2161
    %v2361 = vunpack.c.l.b16 %v2162
    %v2362 = vunpack.c.l.b16 %v2163
    %v2363 = vunpack.c.l.b16 %v2164
    %v2364 = vunpack.c.l.b16 %v2165
    %v2365 = vunpack.c.l.b16 %v2166
    %v2366 = vunpack.c.l.b16 %v2167
    %v2367 = vunpack.c.l.b16 %v2168
    %v2368 = vunpack.c.l.b16 %v2169
    %v2369 = vunpack.c.l.b16 %v2170
    %v2370 = vunpack.c.l.b16 %v2171
    %v2371 = vunpack.c.l.b16 %v2172
    %v2372 = vunpack.c.l.b16 %v2173
    %v2373 = vunpack.c.l.b16 %v2174
    %v2374 = vunpack.c.l.b16 %v2175
    %v2375 = vunpack.c.l.b16 %v2176
    %v2376 = vunpack.c.l.b16 %v2177
    %v2377 = vunpack.c.l.b16 %v2178
    %v2378 = vunpack.c.l.b16 %v2179
    %v2379 = vunpack.c.l.b16 %v2180
    %v2380 = vunpack.c.l.b16 %v2181
    %v2381 = vpack.c.b16 %v2286, %v2285
    %v2382 = vpack.c.b16 %v2288, %v2287
    %v2383 = vpack.c.b16 %v2290, %v2289
    %v2384 = vpack.c.b16 %v2292, %v2291
    %v2385 = vpack.c.b16 %v2294, %v2293
    %v2386 = vpack.c.b16 %v2296, %v2295
    %v2387 = vpack.c.b16 %v2298, %v2297
    %v2388 = vpack.c.b16 %v2300, %v2299
    %v2389 = vpack.c.b16 %v2302, %v2301
    %v2390 = vpack.c.b16 %v2304, %v2303
    %v2391 = vpack.c.b16 %v2306, %v2305
    %v2392 = vpack.c.b16 %v2308, %v2307
    %v2393 = vpack.c.b16 %v2310, %v2309
    %v2394 = vpack.c.b16 %v2312, %v2311
    %v2395 = vpack.c.b16 %v2314, %v2313
    %v2396 = vpack.c.b16 %v2316, %v2315
    %v2397 = vpack.c.b16 %v2318, %v2317
    %v2398 = vpack.c.b16 %v2320, %v2319
    %v2399 = vpack.c.b16 %v2322, %v2321
    %v2400 = vpack.c.b16 %v2324, %v2323
    %v2401 = vpack.c.b16 %v2326, %v2325
    %v2402 = vpack.c.b16 %v2328, %v2327
    %v2403 = vpack.c.b16 %v2330, %v2329
    %v2404 = vpack.c.b16 %v2332, %v2331
    %v2405 = vpack.c.b16 %v2334, %v2333
    %v2406 = vpack.c.b16 %v2336, %v2335
    %v2407 = vpack.c.b16 %v2338, %v2337
    %v2408 = vpack.c.b16 %v2340, %v2339
    %v2409 = vpack.c.b16 %v2342, %v2341
    %v2410 = vpack.c.b16 %v2344, %v2343
    %v2411 = vpack.c.b16 %v2346, %v2345
    %v2412 = vpack.c.b16 %v2348, %v2347
    %v2413 = vpack.c.b16 %v2350, %v2349
    %v2414 = vpack.c.b16 %v2352, %v2351
    %v2415 = vpack.c.b16 %v2354, %v2353
    %v2416 = vpack.c.b16 %v2356, %v2355
    %v2417 = vpack.c.b16 %v2358, %v2357
    %v2418 = vpack.c.b16 %v2360, %v2359
    %v2419 = vpack.c.b16 %v2362, %v2361
    %v2420 = vpack.c.b16 %v2364, %v2363
    %v2421 = vpack.c.b16 %v2366, %v2365
    %v2422 = vpack.c.b16 %v2368, %v2367
    %v2423 = vpack.c.b16 %v2370, %v2369
    %v2424 = vpack.c.b16 %v2372, %v2371
    %v2425 = vpack.c.b16 %v2374, %v2373
    %v2426 = vpack.c.b16 %v2376, %v2375
    %v2427 = vpack.c.b16 %v2378, %v2377
    %v2428 = vpack.c.b16 %v2380, %v2379
    %2477 = vmatprep.subr.bf16.mxu0 0
    %2478 = vmatpush1.bf16.msra.mxu0 %v2381
    %2479 = vmatprep.subr.bf16.mxu0 0
    %2480 = vmatpush1.bf16.msra.mxu0 %v2382
    %2481 = vmatprep.subr.bf16.mxu0 0
    %2482 = vmatpush1.bf16.msra.mxu0 %v2383
    %2483 = vmatprep.subr.bf16.mxu0 0
    %2484 = vmatpush1.bf16.msra.mxu0 %v2384
    %2485 = vmatprep.subr.bf16.mxu0 0
    %2486 = vmatpush1.bf16.msra.mxu0 %v2385
    %2487 = vmatprep.subr.bf16.mxu0 0
    %2488 = vmatpush1.bf16.msra.mxu0 %v2386
    %2489 = vmatprep.subr.bf16.mxu0 0
    %2490 = vmatpush1.bf16.msra.mxu0 %v2387
    %2491 = vmatprep.subr.bf16.mxu0 0
    %2492 = vmatpush1.bf16.msra.mxu0 %v2388
    %2493 = vmatprep.subr.bf16.mxu0 0
    %2494 = vmatpush1.bf16.msra.mxu0 %v2389
    %2495 = vmatprep.subr.bf16.mxu0 0
    %2496 = vmatpush1.bf16.msra.mxu0 %v2390
    %2497 = vmatprep.subr.bf16.mxu0 0
    %2498 = vmatpush1.bf16.msra.mxu0 %v2391
    %2499 = vmatprep.subr.bf16.mxu0 0
    %2500 = vmatpush1.bf16.msra.mxu0 %v2392
    %2501 = vmatprep.subr.bf16.mxu0 0
    %2502 = vmatpush1.bf16.msra.mxu0 %v2393
    %2503 = vmatprep.subr.bf16.mxu0 0
    %2504 = vmatpush1.bf16.msra.mxu0 %v2394
    %2505 = vmatprep.subr.bf16.mxu0 0
    %2506 = vmatpush1.bf16.msra.mxu0 %v2395
    %2507 = vmatprep.subr.bf16.mxu0 0
    %2508 = vmatpush1.bf16.msra.mxu0 %v2396
    %2509 = vmatprep.mubr.bf16.mxu0 %v1259
    %2510 = vmatmul.mubr.bf16.gmra.mrb[0].mxu0 %v1258
    %v2511 = vpop.f32.mrb[0].mxu0
    %v2512 = vadd.f32 %v2187, %v2511
    %v2513 = vpop.f32.mrb[0].mxu0
    %v2514 = vpop.f32.mrb[0].mxu0
    %v2515 = vpop.f32.mrb[0].mxu0
    %2516 = vdwg.mxu0
    %2517 = vmatprep.subr.bf16.mxu0 0
    %2518 = vmatpush1.bf16.msra.mxu0 %v2397
    %2519 = vmatprep.subr.bf16.mxu0 0
    %2520 = vmatpush1.bf16.msra.mxu0 %v2398
    %2521 = vmatprep.subr.bf16.mxu0 0
    %2522 = vmatpush1.bf16.msra.mxu0 %v2399
    %2523 = vmatprep.subr.bf16.mxu0 0
    %2524 = vmatpush1.bf16.msra.mxu0 %v2400
    %2525 = vmatprep.subr.bf16.mxu0 0
    %2526 = vmatpush1.bf16.msra.mxu0 %v2401
    %2527 = vmatprep.subr.bf16.mxu0 0
    %2528 = vmatpush1.bf16.msra.mxu0 %v2402
    %2529 = vmatprep.subr.bf16.mxu0 0
    %2530 = vmatpush1.bf16.msra.mxu0 %v2403
    %2531 = vmatprep.subr.bf16.mxu0 0
    %2532 = vmatpush1.bf16.msra.mxu0 %v2404
    %2533 = vmatprep.subr.bf16.mxu0 0
    %2534 = vmatpush1.bf16.msra.mxu0 %v2405
    %2535 = vmatprep.subr.bf16.mxu0 0
    %2536 = vmatpush1.bf16.msra.mxu0 %v2406
    %2537 = vmatprep.subr.bf16.mxu0 0
    %2538 = vmatpush1.bf16.msra.mxu0 %v2407
    %2539 = vmatprep.subr.bf16.mxu0 0
    %2540 = vmatpush1.bf16.msra.mxu0 %v2408
    %2541 = vmatprep.subr.bf16.mxu0 0
    %2542 = vmatpush1.bf16.msra.mxu0 %v2409
    %2543 = vmatprep.subr.bf16.mxu0 0
    %2544 = vmatpush1.bf16.msra.mxu0 %v2410
    %2545 = vmatprep.subr.bf16.mxu0 0
    %2546 = vmatpush1.bf16.msra.mxu0 %v2411
    %2547 = vmatprep.subr.bf16.mxu0 0
    %2548 = vmatpush1.bf16.msra.mxu0 %v2412
    %2549 = vmatprep.mubr.bf16.mxu0 %v2083
    %2550 = vmatmul.mubr.bf16.gmra.mrb[0].mxu0 %v1260
    %v2551 = vpop.f32.mrb[0].mxu0
    %v2552 = vadd.f32 %v2512, %v2551
    %v2553 = vpop.f32.mrb[0].mxu0
    %v2554 = vpop.f32.mrb[0].mxu0
    %v2555 = vpop.f32.mrb[0].mxu0
    %2556 = vdwg.mxu0
    %2557 = vmatprep.subr.bf16.mxu0 0
    %2558 = vmatpush1.bf16.msra.mxu0 %v2413
    %2559 = vmatprep.subr.bf16.mxu0 0
    %2560 = vmatpush1.bf16.msra.mxu0 %v2414
    %2561 = vmatprep.subr.bf16.mxu0 0
    %2562 = vmatpush1.bf16.msra.mxu0 %v2415
    %2563 = vmatprep.subr.bf16.mxu0 0
    %2564 = vmatpush1.bf16.msra.mxu0 %v2416
    %2565 = vmatprep.subr.bf16.mxu0 0
    %2566 = vmatpush1.bf16.msra.mxu0 %v2417
    %2567 = vmatprep.subr.bf16.mxu0 0
    %2568 = vmatpush1.bf16.msra.mxu0 %v2418
    %2569 = vmatprep.subr.bf16.mxu0 0
    %2570 = vmatpush1.bf16.msra.mxu0 %v2419
    %2571 = vmatprep.subr.bf16.mxu0 0
    %2572 = vmatpush1.bf16.msra.mxu0 %v2420
    %2573 = vmatprep.subr.bf16.mxu0 0
    %2574 = vmatpush1.bf16.msra.mxu0 %v2421
    %2575 = vmatprep.subr.bf16.mxu0 0
    %2576 = vmatpush1.bf16.msra.mxu0 %v2422
    %2577 = vmatprep.subr.bf16.mxu0 0
    %2578 = vmatpush1.bf16.msra.mxu0 %v2423
    %2579 = vmatprep.subr.bf16.mxu0 0
    %2580 = vmatpush1.bf16.msra.mxu0 %v2424
    %2581 = vmatprep.subr.bf16.mxu0 0
    %2582 = vmatpush1.bf16.msra.mxu0 %v2425
    %2583 = vmatprep.subr.bf16.mxu0 0
    %2584 = vmatpush1.bf16.msra.mxu0 %v2426
    %2585 = vmatprep.subr.bf16.mxu0 0
    %2586 = vmatpush1.bf16.msra.mxu0 %v2427
    %2587 = vmatprep.subr.bf16.mxu0 0
    %2588 = vmatpush1.bf16.msra.mxu0 %v2428
    %2589 = vmatprep.mubr.bf16.mxu0 %v2085
    %2590 = vmatmul.mubr.bf16.gmra.mrb[0].mxu0 %v2084
    %v2591 = vpop.f32.mrb[0].mxu0
    %v2592 = vadd.f32 %v2552, %v2591
    %v2593 = vpop.f32.mrb[0].mxu0
    %v2594 = vpop.f32.mrb[0].mxu0
    %v2595 = vpop.f32.mrb[0].mxu0
    %2596 = vdwg.mxu0
    %v2597 = vlaneseq
    %v2598 = vand.u32 %v2597, 127
    %vm2599 = vcmp.lt.s32.totalorder %v2598, 64
    %v2600 = vtanh.pop %v2592
    %v2601 = vsel %vm2599, %v2600, %v2592
    %2602 = vst [vmem:[#allocation13] sm:$0x3] %v2601
    // Predicated region
    $region62: #{tpu_custom_call.1} parent=1 // pred_check
      _
    $region63: #{tpu_custom_call.1} parent=1 // pred_check_branch
      %2604 = sbr.rel (0) target = $region65
    $region64: #{tpu_custom_call.1} parent=1 // pred_region
      %s2606 = ssub.s32 32, 32
      %2607 = vsyncadd [#allocation4], %s2606
      %s2609 = sshll.u32 [#allocation13], 4
      %s2610 = int_to_ptr.vmem [resolvable:$true] %s2609
      %2612 = dma.vmem_to_hbm [thread:$0]  %s2610, 32, %s9, [#allocation4]
    $region65: #{tpu_custom_call.1} parent=1 // pred_fallthru
      _
    // Predicated region
    $region66: #{tpu_custom_call.1} parent=1 // pred_check
      _
    $region67: #{tpu_custom_call.1} parent=1 // pred_check_branch
      %2614 = sbr.rel (0) target = $region69
    $region68: #{tpu_custom_call.1} parent=1 // pred_region
      %2615 = dma.done [#allocation4], 32
    $region69: #{tpu_custom_call.1} parent=1 // pred_fallthru
      _
    %2616 = vsyncpa [#allocation3], 1
    %2617 = vsyncpa [#allocation6], 1
    %2618 = vsyncpa [#allocation9], 1
    %2619 = vsyncpa [#allocation12], 1
    %2620 = vsyncpa [#allocation4], 1

</llo_original>
